<compile_context>
chip_gen: v7x
topology: tpu7x:2x2x1
jax: 0.10.0
libtpu: 0.0.40
codegen_flags: <defaults>
</compile_context>

<pallas_src>
from functools import partial

import jax
import jax.numpy as jnp
from jax.experimental import pallas as pl
from jax.experimental.pallas import tpu as pltpu


def _pick_q_tile(n):
    """Largest convenient q-tile that divides N (full N for small sequences)."""
    for t in (512, 256, 128):
        if n % t == 0 and n > t:
            return t
    return n


def _attention_kernel(x_ref, wqkv_ref, bqkv_ref, wproj_ref, bproj_ref, o_ref, qkv_ref,
                      *, heads, scale, tq):
    # x_ref:     (N, C)    bf16   (batch dim squeezed)
    # wqkv_ref:  (C, 3C)   bf16   (pre-transposed)
    # bqkv_ref:  (1, 3C)   f32
    # wproj_ref: (C, C)    bf16   (pre-transposed)
    # bproj_ref: (1, C)    f32
    # o_ref:     (tq, C)   f32    (batch dim squeezed, q-tiled)
    # qkv_ref:   (N, 3C)   bf16   VMEM scratch, persistent across q tiles
    C = wproj_ref.shape[0]
    Dh = C // heads
    q_idx = pl.program_id(1)

    # --- (1) Full-sequence QKV projection, once per batch element -------------
    @pl.when(q_idx == 0)
    def _():
        qkv = jnp.dot(x_ref[...], wqkv_ref[...],
                      preferred_element_type=jnp.float32)            # (N, 3C) f32 acc
        qkv_ref[...] = (qkv + bqkv_ref[...]).astype(qkv_ref.dtype)   # store bf16

    # --- (2) Query rows for this tile ------------------------------------------
    row0 = pl.multiple_of(q_idx * tq, tq)
    q_block = qkv_ref[pl.ds(row0, tq), pl.ds(0, C)]                  # (tq, C) bf16

    # --- (3) Per-head attention -------------------------------------------------
    # PyTorch qkv column layout is [Q | K | V], each of width C with heads stored
    # contiguously (width Dh), so simple column slices give head-major operands
    # and keep N on the lane axis (lane-dense (tq, N) scores, no reshapes).
    head_outs = []
    for h in range(heads):
        q_h = q_block[:, h * Dh:(h + 1) * Dh]                        # (tq, Dh) bf16
        k_h = qkv_ref[:, C + h * Dh:C + (h + 1) * Dh]                # (N, Dh)  bf16
        v_h = qkv_ref[:, 2 * C + h * Dh:2 * C + (h + 1) * Dh]        # (N, Dh)  bf16

        s = jax.lax.dot_general(q_h, k_h, (((1,), (1,)), ((), ())),
                                preferred_element_type=jnp.float32) * scale  # (tq, N) f32
        m = jnp.max(s, axis=-1, keepdims=True)
        e = jnp.exp(s - m)                                           # f32 softmax
        l = jnp.sum(e, axis=-1, keepdims=True)
        p = e * pl.reciprocal(l, approx=True)                        # EUP reciprocal
        head_outs.append(jnp.dot(p.astype(v_h.dtype), v_h,
                                 preferred_element_type=jnp.float32))  # (tq, Dh) f32

    out = jnp.concatenate(head_outs, axis=-1)                        # (tq, C) f32

    # --- (4) Output projection ---------------------------------------------------
    y = jnp.dot(out.astype(wproj_ref.dtype), wproj_ref[...],
                preferred_element_type=jnp.float32) + bproj_ref[...]  # (tq, C) f32
    o_ref[...] = y.astype(o_ref.dtype)


def attention_forward(x, w_qkv, b_qkv, w_proj, b_proj, heads):
    """x: (B, N, C); w_qkv: (3C, C); b_qkv: (3C,); w_proj: (C, C); b_proj: (C,)."""
    B, N, C = x.shape
    Dh = C // heads
    scale = float(Dh) ** -0.5
    tq = _pick_q_tile(N)
    num_q = N // tq

    # bf16 matmul inputs (weights pre-transposed to (in, out)); biases stay f32.
    x_bf16 = jnp.asarray(x).astype(jnp.bfloat16)
    w_qkv_t = jnp.asarray(w_qkv).T.astype(jnp.bfloat16)               # (C, 3C)
    w_proj_t = jnp.asarray(w_proj).T.astype(jnp.bfloat16)             # (C, C)
    b_qkv_2d = jnp.asarray(b_qkv, jnp.float32)[None, :]               # (1, 3C)
    b_proj_2d = jnp.asarray(b_proj, jnp.float32)[None, :]             # (1, C)

    kernel = partial(_attention_kernel, heads=heads, scale=scale, tq=tq)

    cost = pl.CostEstimate(
        flops=(2 * B * N * C * (3 * C)            # qkv projection
               + 4 * B * heads * N * N * Dh        # scores + attn @ v
               + 2 * B * N * C * C),               # output projection
        transcendentals=B * heads * N * N,         # exp in softmax
        bytes_accessed=(B * N * C * 2              # x (bf16)
                        + C * 3 * C * 2 + C * C * 2  # weights (bf16)
                        + 3 * C * 4 + C * 4         # biases (f32)
                        + B * N * C * 4),           # output (f32)
    )

    return pl.pallas_call(
        kernel,
        out_shape=jax.ShapeDtypeStruct((B, N, C), x.dtype),
        grid_spec=pltpu.PrefetchScalarGridSpec(
            num_scalar_prefetch=0,
            grid=(B, num_q),
            in_specs=[
                # x: full sequence per batch element, resident across q tiles.
                pl.BlockSpec((pl.Squeezed(), N, C), lambda b, q: (b, 0, 0)),
                pl.BlockSpec((C, 3 * C), lambda b, q: (0, 0)),        # W_qkv^T
                pl.BlockSpec((1, 3 * C), lambda b, q: (0, 0)),        # b_qkv
                pl.BlockSpec((C, C), lambda b, q: (0, 0)),            # W_proj^T
                pl.BlockSpec((1, C), lambda b, q: (0, 0)),            # b_proj
            ],
            out_specs=pl.BlockSpec((pl.Squeezed(), tq, C), lambda b, q: (b, q, 0)),
            scratch_shapes=[pltpu.VMEM((N, 3 * C), jnp.bfloat16)],    # cached qkv
        ),
        compiler_params=pltpu.CompilerParams(
            dimension_semantics=("parallel", "arbitrary"),
            vmem_limit_bytes=48 * 1024 * 1024,   # > scoped default, < v7x 64 MiB physical
        ),
        cost_estimate=cost,
    )(x_bf16, w_qkv_t, b_qkv_2d, w_proj_t, b_proj_2d)


def _attention_ref(x, w_qkv, b_qkv, w_proj, b_proj, heads):
    """Pure-JAX f32 reference mirroring the PyTorch forward."""
    B, N, C = x.shape
    head_dim = C // heads
    scale = float(head_dim) ** -0.5
    qkv = x @ w_qkv.T + b_qkv                              # (B, N, 3C)
    qkv = qkv.reshape(B, N, 3, heads, head_dim)
    qkv = jnp.transpose(qkv, (2, 0, 3, 1, 4))              # (3, B, H, N, Dh)
    q, k, v = qkv[0], qkv[1], qkv[2]
    attn = (q @ jnp.swapaxes(k, -2, -1)) * scale
    attn = jax.nn.softmax(attn, axis=-1)
    out = attn @ v                                         # (B, H, N, Dh)
    out = jnp.transpose(out, (0, 2, 1, 3)).reshape(B, N, C)
    return out @ w_proj.T + b_proj


if __name__ == "__main__":
    # Small shapes consistent with the module: embed_dim=32, heads=8 -> head_dim=4
    B, N, C, H = 2, 8, 32, 8

    key = jax.random.PRNGKey(0)
    kx, k1, k2, k3, k4 = jax.random.split(key, 5)

    x = jax.random.normal(kx, (B, N, C), dtype=jnp.float32)

    # PyTorch nn.Linear parameter shapes: weight (out, in), bias (out,)
    w_qkv = jax.random.normal(k1, (3 * C, C), dtype=jnp.float32) * 0.05
    b_qkv = jax.random.normal(k2, (3 * C,), dtype=jnp.float32) * 0.05
    w_proj = jax.random.normal(k3, (C, C), dtype=jnp.float32) * 0.05
    b_proj = jax.random.normal(k4, (C,), dtype=jnp.float32) * 0.05

    out = attention_forward(x, w_qkv, b_qkv, w_proj, b_proj, heads=H)
    out = jax.block_until_ready(out)

    ref = _attention_ref(x, w_qkv, b_qkv, w_proj, b_proj, heads=H)
    assert out.shape == (B, N, C)
    # Kernel uses bf16 MXU inputs (f32 accumulation) + approx reciprocal, so compare
    # against the f32 reference with a bf16-appropriate tolerance.
    max_err = float(jnp.max(jnp.abs(out - ref)))
    assert max_err < 1e-2, f"mismatch vs reference: max abs err {max_err}"

    print("KERNEL_OK")
</pallas_src>

<mosaic_0001>
module attributes {stable_mosaic.version = 11 : i64} {
  func.func @_attention_kernel(%arg0: i32, %arg1: i32, %arg2: memref<1x8x32xbf16, #tpu.memory_space<vmem>>, %arg3: memref<32x96xbf16, #tpu.memory_space<vmem>>, %arg4: memref<1x96xf32, #tpu.memory_space<vmem>>, %arg5: memref<32x32xbf16, #tpu.memory_space<vmem>>, %arg6: memref<1x32xf32, #tpu.memory_space<vmem>>, %arg7: memref<1x8x32xf32, #tpu.memory_space<vmem>>, %arg8: memref<8x96xbf16, #tpu.memory_space<vmem>>) attributes {dimension_semantics = [#tpu.dimension_semantics<parallel>, #tpu.dimension_semantics<arbitrary>], iteration_bounds = array<i64: 2, 1>, scalar_prefetch = 0 : i64, scratch_operands = 1 : i64, tpu.core_type = #tpu.core_type<tc>, window_params = [{transform_indices = @transform_0, window_bounds = array<i64: 1, 8, 32>}, {pipeline_mode = #tpu.pipeline_mode<synchronous>, transform_indices = @transform_1, window_bounds = array<i64: 32, 96>}, {pipeline_mode = #tpu.pipeline_mode<synchronous>, transform_indices = @transform_2, window_bounds = array<i64: 1, 96>}, {pipeline_mode = #tpu.pipeline_mode<synchronous>, transform_indices = @transform_3, window_bounds = array<i64: 32, 32>}, {pipeline_mode = #tpu.pipeline_mode<synchronous>, transform_indices = @transform_4, window_bounds = array<i64: 1, 32>}, {transform_indices = @transform_5, window_bounds = array<i64: 1, 8, 32>}]} {
    %c0_i32 = arith.constant 0 : i32
    %0 = arith.cmpi eq, %arg1, %c0_i32 : i32
    %1 = arith.extui %0 : i1 to i32
    %c0_i32_0 = arith.constant 0 : i32
    %2 = arith.cmpi ne, %1, %c0_i32_0 : i32
    scf.if %2 {
      %c0_64 = arith.constant 0 : index
      %c0_65 = arith.constant 0 : index
      %c0_66 = arith.constant 0 : index
      %161 = vector.load %arg2[%c0_64, %c0_65, %c0_66] : memref<1x8x32xbf16, #tpu.memory_space<vmem>>, vector<1x8x32xbf16>
      %162 = vector.shape_cast %161 : vector<1x8x32xbf16> to vector<8x32xbf16>
      %c0_67 = arith.constant 0 : index
      %c0_68 = arith.constant 0 : index
      %163 = vector.load %arg3[%c0_67, %c0_68] : memref<32x96xbf16, #tpu.memory_space<vmem>>, vector<32x96xbf16>
      %cst_69 = arith.constant dense<0.000000e+00> : vector<8x96xf32>
      %164 = tpu.matmul %162, %163, %cst_69 {dimension_numbers = #tpu.dot_dimension_numbers<[1], [0], [0], [1], [0, 0, 1, 1], [], []>} : vector<8x32xbf16>, vector<32x96xbf16>, vector<8x96xf32> -> vector<8x96xf32>
      %c0_70 = arith.constant 0 : index
      %c0_71 = arith.constant 0 : index
      %165 = vector.load %arg4[%c0_70, %c0_71] : memref<1x96xf32, #tpu.memory_space<vmem>>, vector<1x96xf32>
      %166 = vector.broadcast %165 : vector<1x96xf32> to vector<8x96xf32>
      %167 = arith.addf %164, %166 : vector<8x96xf32>
      %168 = arith.truncf %167 : vector<8x96xf32> to vector<8x96xbf16>
      %c0_72 = arith.constant 0 : index
      %c0_73 = arith.constant 0 : index
      %169 = vector.load %arg8[%c0_72, %c0_73] : memref<8x96xbf16, #tpu.memory_space<vmem>>, vector<8x96xbf16>
      tpu.vector_store %arg8[%c0_72, %c0_73], %168 {strides = array<i32>} : memref<8x96xbf16, #tpu.memory_space<vmem>>, vector<8x96xbf16>,
    } else {
    }
    %c8_i32 = arith.constant 8 : i32
    %3 = arith.muli %arg1, %c8_i32 : i32
    %4 = tpu.assume_multiple %3, 8 : i32
    %5 = arith.index_cast %4 : i32 to index
    %c0 = arith.constant 0 : index
    %6 = vector.load %arg8[%5, %c0] : memref<8x96xbf16, #tpu.memory_space<vmem>>, vector<8x32xbf16>
    %7 = vector.extract_strided_slice %6 {offsets = [0, 0], sizes = [8, 4], strides = [1, 1]} : vector<8x32xbf16> to vector<8x4xbf16>
    %c0_1 = arith.constant 0 : index
    %c32 = arith.constant 32 : index
    %8 = vector.load %arg8[%c0_1, %c32] : memref<8x96xbf16, #tpu.memory_space<vmem>>, vector<8x4xbf16>
    %c0_2 = arith.constant 0 : index
    %c64 = arith.constant 64 : index
    %9 = vector.load %arg8[%c0_2, %c64] : memref<8x96xbf16, #tpu.memory_space<vmem>>, vector<8x4xbf16>
    %cst = arith.constant dense<0.000000e+00> : vector<8x8xf32>
    %10 = tpu.matmul %7, %8, %cst {dimension_numbers = #tpu.dot_dimension_numbers<[1], [1], [0], [0], [0, 0, 1, 0], [], []>} : vector<8x4xbf16>, vector<8x4xbf16>, vector<8x8xf32> -> vector<8x8xf32>
    %cst_3 = arith.constant 5.000000e-01 : f32
    %11 = vector.broadcast %cst_3 : f32 to vector<8x8xf32>
    %12 = arith.mulf %10, %11 : vector<8x8xf32>
    %cst_4 = arith.constant dense<0xFF800000> : vector<8xf32>
    %13 = vector.multi_reduction <maximumf>, %12, %cst_4 [1] : vector<8x8xf32> to vector<8xf32>
    %14 = vector.shape_cast %13 : vector<8xf32> to vector<8x1xf32>
    %15 = vector.broadcast %14 : vector<8x1xf32> to vector<8x8xf32>
    %16 = arith.subf %12, %15 : vector<8x8xf32>
    %17 = math.exp %16 : vector<8x8xf32>
    %cst_5 = arith.constant dense<0.000000e+00> : vector<8xf32>
    %18 = vector.multi_reduction <add>, %17, %cst_5 [1] : vector<8x8xf32> to vector<8xf32>
    %19 = vector.shape_cast %18 : vector<8xf32> to vector<8x1xf32>
    %20 = tpu.reciprocal %19 {approx = true} : vector<8x1xf32> -> vector<8x1xf32>
    %21 = vector.broadcast %20 : vector<8x1xf32> to vector<8x8xf32>
    %22 = arith.mulf %17, %21 : vector<8x8xf32>
    %23 = arith.truncf %22 : vector<8x8xf32> to vector<8x8xbf16>
    %cst_6 = arith.constant dense<0.000000e+00> : vector<8x4xf32>
    %24 = tpu.matmul %23, %9, %cst_6 {dimension_numbers = #tpu.dot_dimension_numbers<[1], [0], [0], [1], [0, 0, 1, 1], [], []>} : vector<8x8xbf16>, vector<8x4xbf16>, vector<8x4xf32> -> vector<8x4xf32>
    %25 = vector.extract_strided_slice %6 {offsets = [0, 4], sizes = [8, 4], strides = [1, 1]} : vector<8x32xbf16> to vector<8x4xbf16>
    %c0_7 = arith.constant 0 : index
    %c36 = arith.constant 36 : index
    %26 = vector.load %arg8[%c0_7, %c36] : memref<8x96xbf16, #tpu.memory_space<vmem>>, vector<8x4xbf16>
    %c0_8 = arith.constant 0 : index
    %c68 = arith.constant 68 : index
    %27 = vector.load %arg8[%c0_8, %c68] : memref<8x96xbf16, #tpu.memory_space<vmem>>, vector<8x4xbf16>
    %cst_9 = arith.constant dense<0.000000e+00> : vector<8x8xf32>
    %28 = tpu.matmul %25, %26, %cst_9 {dimension_numbers = #tpu.dot_dimension_numbers<[1], [1], [0], [0], [0, 0, 1, 0], [], []>} : vector<8x4xbf16>, vector<8x4xbf16>, vector<8x8xf32> -> vector<8x8xf32>
    %cst_10 = arith.constant 5.000000e-01 : f32
    %29 = vector.broadcast %cst_10 : f32 to vector<8x8xf32>
    %30 = arith.mulf %28, %29 : vector<8x8xf32>
    %cst_11 = arith.constant dense<0xFF800000> : vector<8xf32>
    %31 = vector.multi_reduction <maximumf>, %30, %cst_11 [1] : vector<8x8xf32> to vector<8xf32>
    %32 = vector.shape_cast %31 : vector<8xf32> to vector<8x1xf32>
    %33 = vector.broadcast %32 : vector<8x1xf32> to vector<8x8xf32>
    %34 = arith.subf %30, %33 : vector<8x8xf32>
    %35 = math.exp %34 : vector<8x8xf32>
    %cst_12 = arith.constant dense<0.000000e+00> : vector<8xf32>
    %36 = vector.multi_reduction <add>, %35, %cst_12 [1] : vector<8x8xf32> to vector<8xf32>
    %37 = vector.shape_cast %36 : vector<8xf32> to vector<8x1xf32>
    %38 = tpu.reciprocal %37 {approx = true} : vector<8x1xf32> -> vector<8x1xf32>
    %39 = vector.broadcast %38 : vector<8x1xf32> to vector<8x8xf32>
    %40 = arith.mulf %35, %39 : vector<8x8xf32>
    %41 = arith.truncf %40 : vector<8x8xf32> to vector<8x8xbf16>
    %cst_13 = arith.constant dense<0.000000e+00> : vector<8x4xf32>
    %42 = tpu.matmul %41, %27, %cst_13 {dimension_numbers = #tpu.dot_dimension_numbers<[1], [0], [0], [1], [0, 0, 1, 1], [], []>} : vector<8x8xbf16>, vector<8x4xbf16>, vector<8x4xf32> -> vector<8x4xf32>
    %43 = vector.extract_strided_slice %6 {offsets = [0, 8], sizes = [8, 4], strides = [1, 1]} : vector<8x32xbf16> to vector<8x4xbf16>
    %c0_14 = arith.constant 0 : index
    %c40 = arith.constant 40 : index
    %44 = vector.load %arg8[%c0_14, %c40] : memref<8x96xbf16, #tpu.memory_space<vmem>>, vector<8x4xbf16>
    %c0_15 = arith.constant 0 : index
    %c72 = arith.constant 72 : index
    %45 = vector.load %arg8[%c0_15, %c72] : memref<8x96xbf16, #tpu.memory_space<vmem>>, vector<8x4xbf16>
    %cst_16 = arith.constant dense<0.000000e+00> : vector<8x8xf32>
    %46 = tpu.matmul %43, %44, %cst_16 {dimension_numbers = #tpu.dot_dimension_numbers<[1], [1], [0], [0], [0, 0, 1, 0], [], []>} : vector<8x4xbf16>, vector<8x4xbf16>, vector<8x8xf32> -> vector<8x8xf32>
    %cst_17 = arith.constant 5.000000e-01 : f32
    %47 = vector.broadcast %cst_17 : f32 to vector<8x8xf32>
    %48 = arith.mulf %46, %47 : vector<8x8xf32>
    %cst_18 = arith.constant dense<0xFF800000> : vector<8xf32>
    %49 = vector.multi_reduction <maximumf>, %48, %cst_18 [1] : vector<8x8xf32> to vector<8xf32>
    %50 = vector.shape_cast %49 : vector<8xf32> to vector<8x1xf32>
    %51 = vector.broadcast %50 : vector<8x1xf32> to vector<8x8xf32>
    %52 = arith.subf %48, %51 : vector<8x8xf32>
    %53 = math.exp %52 : vector<8x8xf32>
    %cst_19 = arith.constant dense<0.000000e+00> : vector<8xf32>
    %54 = vector.multi_reduction <add>, %53, %cst_19 [1] : vector<8x8xf32> to vector<8xf32>
    %55 = vector.shape_cast %54 : vector<8xf32> to vector<8x1xf32>
    %56 = tpu.reciprocal %55 {approx = true} : vector<8x1xf32> -> vector<8x1xf32>
    %57 = vector.broadcast %56 : vector<8x1xf32> to vector<8x8xf32>
    %58 = arith.mulf %53, %57 : vector<8x8xf32>
    %59 = arith.truncf %58 : vector<8x8xf32> to vector<8x8xbf16>
    %cst_20 = arith.constant dense<0.000000e+00> : vector<8x4xf32>
    %60 = tpu.matmul %59, %45, %cst_20 {dimension_numbers = #tpu.dot_dimension_numbers<[1], [0], [0], [1], [0, 0, 1, 1], [], []>} : vector<8x8xbf16>, vector<8x4xbf16>, vector<8x4xf32> -> vector<8x4xf32>
    %61 = vector.extract_strided_slice %6 {offsets = [0, 12], sizes = [8, 4], strides = [1, 1]} : vector<8x32xbf16> to vector<8x4xbf16>
    %c0_21 = arith.constant 0 : index
    %c44 = arith.constant 44 : index
    %62 = vector.load %arg8[%c0_21, %c44] : memref<8x96xbf16, #tpu.memory_space<vmem>>, vector<8x4xbf16>
    %c0_22 = arith.constant 0 : index
    %c76 = arith.constant 76 : index
    %63 = vector.load %arg8[%c0_22, %c76] : memref<8x96xbf16, #tpu.memory_space<vmem>>, vector<8x4xbf16>
    %cst_23 = arith.constant dense<0.000000e+00> : vector<8x8xf32>
    %64 = tpu.matmul %61, %62, %cst_23 {dimension_numbers = #tpu.dot_dimension_numbers<[1], [1], [0], [0], [0, 0, 1, 0], [], []>} : vector<8x4xbf16>, vector<8x4xbf16>, vector<8x8xf32> -> vector<8x8xf32>
    %cst_24 = arith.constant 5.000000e-01 : f32
    %65 = vector.broadcast %cst_24 : f32 to vector<8x8xf32>
    %66 = arith.mulf %64, %65 : vector<8x8xf32>
    %cst_25 = arith.constant dense<0xFF800000> : vector<8xf32>
    %67 = vector.multi_reduction <maximumf>, %66, %cst_25 [1] : vector<8x8xf32> to vector<8xf32>
    %68 = vector.shape_cast %67 : vector<8xf32> to vector<8x1xf32>
    %69 = vector.broadcast %68 : vector<8x1xf32> to vector<8x8xf32>
    %70 = arith.subf %66, %69 : vector<8x8xf32>
    %71 = math.exp %70 : vector<8x8xf32>
    %cst_26 = arith.constant dense<0.000000e+00> : vector<8xf32>
    %72 = vector.multi_reduction <add>, %71, %cst_26 [1] : vector<8x8xf32> to vector<8xf32>
    %73 = vector.shape_cast %72 : vector<8xf32> to vector<8x1xf32>
    %74 = tpu.reciprocal %73 {approx = true} : vector<8x1xf32> -> vector<8x1xf32>
    %75 = vector.broadcast %74 : vector<8x1xf32> to vector<8x8xf32>
    %76 = arith.mulf %71, %75 : vector<8x8xf32>
    %77 = arith.truncf %76 : vector<8x8xf32> to vector<8x8xbf16>
    %cst_27 = arith.constant dense<0.000000e+00> : vector<8x4xf32>
    %78 = tpu.matmul %77, %63, %cst_27 {dimension_numbers = #tpu.dot_dimension_numbers<[1], [0], [0], [1], [0, 0, 1, 1], [], []>} : vector<8x8xbf16>, vector<8x4xbf16>, vector<8x4xf32> -> vector<8x4xf32>
    %79 = vector.extract_strided_slice %6 {offsets = [0, 16], sizes = [8, 4], strides = [1, 1]} : vector<8x32xbf16> to vector<8x4xbf16>
    %c0_28 = arith.constant 0 : index
    %c48 = arith.constant 48 : index
    %80 = vector.load %arg8[%c0_28, %c48] : memref<8x96xbf16, #tpu.memory_space<vmem>>, vector<8x4xbf16>
    %c0_29 = arith.constant 0 : index
    %c80 = arith.constant 80 : index
    %81 = vector.load %arg8[%c0_29, %c80] : memref<8x96xbf16, #tpu.memory_space<vmem>>, vector<8x4xbf16>
    %cst_30 = arith.constant dense<0.000000e+00> : vector<8x8xf32>
    %82 = tpu.matmul %79, %80, %cst_30 {dimension_numbers = #tpu.dot_dimension_numbers<[1], [1], [0], [0], [0, 0, 1, 0], [], []>} : vector<8x4xbf16>, vector<8x4xbf16>, vector<8x8xf32> -> vector<8x8xf32>
    %cst_31 = arith.constant 5.000000e-01 : f32
    %83 = vector.broadcast %cst_31 : f32 to vector<8x8xf32>
    %84 = arith.mulf %82, %83 : vector<8x8xf32>
    %cst_32 = arith.constant dense<0xFF800000> : vector<8xf32>
    %85 = vector.multi_reduction <maximumf>, %84, %cst_32 [1] : vector<8x8xf32> to vector<8xf32>
    %86 = vector.shape_cast %85 : vector<8xf32> to vector<8x1xf32>
    %87 = vector.broadcast %86 : vector<8x1xf32> to vector<8x8xf32>
    %88 = arith.subf %84, %87 : vector<8x8xf32>
    %89 = math.exp %88 : vector<8x8xf32>
    %cst_33 = arith.constant dense<0.000000e+00> : vector<8xf32>
    %90 = vector.multi_reduction <add>, %89, %cst_33 [1] : vector<8x8xf32> to vector<8xf32>
    %91 = vector.shape_cast %90 : vector<8xf32> to vector<8x1xf32>
    %92 = tpu.reciprocal %91 {approx = true} : vector<8x1xf32> -> vector<8x1xf32>
    %93 = vector.broadcast %92 : vector<8x1xf32> to vector<8x8xf32>
    %94 = arith.mulf %89, %93 : vector<8x8xf32>
    %95 = arith.truncf %94 : vector<8x8xf32> to vector<8x8xbf16>
    %cst_34 = arith.constant dense<0.000000e+00> : vector<8x4xf32>
    %96 = tpu.matmul %95, %81, %cst_34 {dimension_numbers = #tpu.dot_dimension_numbers<[1], [0], [0], [1], [0, 0, 1, 1], [], []>} : vector<8x8xbf16>, vector<8x4xbf16>, vector<8x4xf32> -> vector<8x4xf32>
    %97 = vector.extract_strided_slice %6 {offsets = [0, 20], sizes = [8, 4], strides = [1, 1]} : vector<8x32xbf16> to vector<8x4xbf16>
    %c0_35 = arith.constant 0 : index
    %c52 = arith.constant 52 : index
    %98 = vector.load %arg8[%c0_35, %c52] : memref<8x96xbf16, #tpu.memory_space<vmem>>, vector<8x4xbf16>
    %c0_36 = arith.constant 0 : index
    %c84 = arith.constant 84 : index
    %99 = vector.load %arg8[%c0_36, %c84] : memref<8x96xbf16, #tpu.memory_space<vmem>>, vector<8x4xbf16>
    %cst_37 = arith.constant dense<0.000000e+00> : vector<8x8xf32>
    %100 = tpu.matmul %97, %98, %cst_37 {dimension_numbers = #tpu.dot_dimension_numbers<[1], [1], [0], [0], [0, 0, 1, 0], [], []>} : vector<8x4xbf16>, vector<8x4xbf16>, vector<8x8xf32> -> vector<8x8xf32>
    %cst_38 = arith.constant 5.000000e-01 : f32
    %101 = vector.broadcast %cst_38 : f32 to vector<8x8xf32>
    %102 = arith.mulf %100, %101 : vector<8x8xf32>
    %cst_39 = arith.constant dense<0xFF800000> : vector<8xf32>
    %103 = vector.multi_reduction <maximumf>, %102, %cst_39 [1] : vector<8x8xf32> to vector<8xf32>
    %104 = vector.shape_cast %103 : vector<8xf32> to vector<8x1xf32>
    %105 = vector.broadcast %104 : vector<8x1xf32> to vector<8x8xf32>
    %106 = arith.subf %102, %105 : vector<8x8xf32>
    %107 = math.exp %106 : vector<8x8xf32>
    %cst_40 = arith.constant dense<0.000000e+00> : vector<8xf32>
    %108 = vector.multi_reduction <add>, %107, %cst_40 [1] : vector<8x8xf32> to vector<8xf32>
    %109 = vector.shape_cast %108 : vector<8xf32> to vector<8x1xf32>
    %110 = tpu.reciprocal %109 {approx = true} : vector<8x1xf32> -> vector<8x1xf32>
    %111 = vector.broadcast %110 : vector<8x1xf32> to vector<8x8xf32>
    %112 = arith.mulf %107, %111 : vector<8x8xf32>
    %113 = arith.truncf %112 : vector<8x8xf32> to vector<8x8xbf16>
    %cst_41 = arith.constant dense<0.000000e+00> : vector<8x4xf32>
    %114 = tpu.matmul %113, %99, %cst_41 {dimension_numbers = #tpu.dot_dimension_numbers<[1], [0], [0], [1], [0, 0, 1, 1], [], []>} : vector<8x8xbf16>, vector<8x4xbf16>, vector<8x4xf32> -> vector<8x4xf32>
    %115 = vector.extract_strided_slice %6 {offsets = [0, 24], sizes = [8, 4], strides = [1, 1]} : vector<8x32xbf16> to vector<8x4xbf16>
    %c0_42 = arith.constant 0 : index
    %c56 = arith.constant 56 : index
    %116 = vector.load %arg8[%c0_42, %c56] : memref<8x96xbf16, #tpu.memory_space<vmem>>, vector<8x4xbf16>
    %c0_43 = arith.constant 0 : index
    %c88 = arith.constant 88 : index
    %117 = vector.load %arg8[%c0_43, %c88] : memref<8x96xbf16, #tpu.memory_space<vmem>>, vector<8x4xbf16>
    %cst_44 = arith.constant dense<0.000000e+00> : vector<8x8xf32>
    %118 = tpu.matmul %115, %116, %cst_44 {dimension_numbers = #tpu.dot_dimension_numbers<[1], [1], [0], [0], [0, 0, 1, 0], [], []>} : vector<8x4xbf16>, vector<8x4xbf16>, vector<8x8xf32> -> vector<8x8xf32>
    %cst_45 = arith.constant 5.000000e-01 : f32
    %119 = vector.broadcast %cst_45 : f32 to vector<8x8xf32>
    %120 = arith.mulf %118, %119 : vector<8x8xf32>
    %cst_46 = arith.constant dense<0xFF800000> : vector<8xf32>
    %121 = vector.multi_reduction <maximumf>, %120, %cst_46 [1] : vector<8x8xf32> to vector<8xf32>
    %122 = vector.shape_cast %121 : vector<8xf32> to vector<8x1xf32>
    %123 = vector.broadcast %122 : vector<8x1xf32> to vector<8x8xf32>
    %124 = arith.subf %120, %123 : vector<8x8xf32>
    %125 = math.exp %124 : vector<8x8xf32>
    %cst_47 = arith.constant dense<0.000000e+00> : vector<8xf32>
    %126 = vector.multi_reduction <add>, %125, %cst_47 [1] : vector<8x8xf32> to vector<8xf32>
    %127 = vector.shape_cast %126 : vector<8xf32> to vector<8x1xf32>
    %128 = tpu.reciprocal %127 {approx = true} : vector<8x1xf32> -> vector<8x1xf32>
    %129 = vector.broadcast %128 : vector<8x1xf32> to vector<8x8xf32>
    %130 = arith.mulf %125, %129 : vector<8x8xf32>
    %131 = arith.truncf %130 : vector<8x8xf32> to vector<8x8xbf16>
    %cst_48 = arith.constant dense<0.000000e+00> : vector<8x4xf32>
    %132 = tpu.matmul %131, %117, %cst_48 {dimension_numbers = #tpu.dot_dimension_numbers<[1], [0], [0], [1], [0, 0, 1, 1], [], []>} : vector<8x8xbf16>, vector<8x4xbf16>, vector<8x4xf32> -> vector<8x4xf32>
    %133 = vector.extract_strided_slice %6 {offsets = [0, 28], sizes = [8, 4], strides = [1, 1]} : vector<8x32xbf16> to vector<8x4xbf16>
    %c0_49 = arith.constant 0 : index
    %c60 = arith.constant 60 : index
    %134 = vector.load %arg8[%c0_49, %c60] : memref<8x96xbf16, #tpu.memory_space<vmem>>, vector<8x4xbf16>
    %c0_50 = arith.constant 0 : index
    %c92 = arith.constant 92 : index
    %135 = vector.load %arg8[%c0_50, %c92] : memref<8x96xbf16, #tpu.memory_space<vmem>>, vector<8x4xbf16>
    %cst_51 = arith.constant dense<0.000000e+00> : vector<8x8xf32>
    %136 = tpu.matmul %133, %134, %cst_51 {dimension_numbers = #tpu.dot_dimension_numbers<[1], [1], [0], [0], [0, 0, 1, 0], [], []>} : vector<8x4xbf16>, vector<8x4xbf16>, vector<8x8xf32> -> vector<8x8xf32>
    %cst_52 = arith.constant 5.000000e-01 : f32
    %137 = vector.broadcast %cst_52 : f32 to vector<8x8xf32>
    %138 = arith.mulf %136, %137 : vector<8x8xf32>
    %cst_53 = arith.constant dense<0xFF800000> : vector<8xf32>
    %139 = vector.multi_reduction <maximumf>, %138, %cst_53 [1] : vector<8x8xf32> to vector<8xf32>
    %140 = vector.shape_cast %139 : vector<8xf32> to vector<8x1xf32>
    %141 = vector.broadcast %140 : vector<8x1xf32> to vector<8x8xf32>
    %142 = arith.subf %138, %141 : vector<8x8xf32>
    %143 = math.exp %142 : vector<8x8xf32>
    %cst_54 = arith.constant dense<0.000000e+00> : vector<8xf32>
    %144 = vector.multi_reduction <add>, %143, %cst_54 [1] : vector<8x8xf32> to vector<8xf32>
    %145 = vector.shape_cast %144 : vector<8xf32> to vector<8x1xf32>
    %146 = tpu.reciprocal %145 {approx = true} : vector<8x1xf32> -> vector<8x1xf32>
    %147 = vector.broadcast %146 : vector<8x1xf32> to vector<8x8xf32>
    %148 = arith.mulf %143, %147 : vector<8x8xf32>
    %149 = arith.truncf %148 : vector<8x8xf32> to vector<8x8xbf16>
    %cst_55 = arith.constant dense<0.000000e+00> : vector<8x4xf32>
    %150 = tpu.matmul %149, %135, %cst_55 {dimension_numbers = #tpu.dot_dimension_numbers<[1], [0], [0], [1], [0, 0, 1, 1], [], []>} : vector<8x8xbf16>, vector<8x4xbf16>, vector<8x4xf32> -> vector<8x4xf32>
    %151 = tpu.concatenate %24, %42, %60, %78, %96, %114, %132, %150 in 1 : vector<8x4xf32>, vector<8x4xf32>, vector<8x4xf32>, vector<8x4xf32>, vector<8x4xf32>, vector<8x4xf32>, vector<8x4xf32>, vector<8x4xf32> -> vector<8x32xf32>
    %152 = arith.truncf %151 : vector<8x32xf32> to vector<8x32xbf16>
    %c0_56 = arith.constant 0 : index
    %c0_57 = arith.constant 0 : index
    %153 = vector.load %arg5[%c0_56, %c0_57] : memref<32x32xbf16, #tpu.memory_space<vmem>>, vector<32x32xbf16>
    %cst_58 = arith.constant dense<0.000000e+00> : vector<8x32xf32>
    %154 = tpu.matmul %152, %153, %cst_58 {dimension_numbers = #tpu.dot_dimension_numbers<[1], [0], [0], [1], [0, 0, 1, 1], [], []>} : vector<8x32xbf16>, vector<32x32xbf16>, vector<8x32xf32> -> vector<8x32xf32>
    %c0_59 = arith.constant 0 : index
    %c0_60 = arith.constant 0 : index
    %155 = vector.load %arg6[%c0_59, %c0_60] : memref<1x32xf32, #tpu.memory_space<vmem>>, vector<1x32xf32>
    %156 = vector.broadcast %155 : vector<1x32xf32> to vector<8x32xf32>
    %157 = arith.addf %154, %156 : vector<8x32xf32>
    %c0_61 = arith.constant 0 : index
    %c0_62 = arith.constant 0 : index
    %c0_63 = arith.constant 0 : index
    %158 = vector.load %arg7[%c0_61, %c0_62, %c0_63] : memref<1x8x32xf32, #tpu.memory_space<vmem>>, vector<1x8x32xf32>
    %159 = vector.shape_cast %158 : vector<1x8x32xf32> to vector<8x32xf32>
    %160 = vector.shape_cast %157 : vector<8x32xf32> to vector<1x8x32xf32>
    tpu.vector_store %arg7[%c0_61, %c0_62, %c0_63], %160 {strides = array<i32>} : memref<1x8x32xf32, #tpu.memory_space<vmem>>, vector<1x8x32xf32>,
    return
  }
  func.func @transform_0(%arg0: i32, %arg1: i32) -> (i32, i32, i32) {
    %c0_i32 = arith.constant 0 : i32
    %c0_i32_0 = arith.constant 0 : i32
    %c0_i32_1 = arith.constant 0 : i32
    return %arg0, %c0_i32, %c0_i32_0 : i32, i32, i32
  }
  func.func @transform_1(%arg0: i32, %arg1: i32) -> (i32, i32) {
    %c0_i32 = arith.constant 0 : i32
    %c0_i32_0 = arith.constant 0 : i32
    %c0_i32_1 = arith.constant 0 : i32
    return %c0_i32, %c0_i32_0 : i32, i32
  }
  func.func @transform_2(%arg0: i32, %arg1: i32) -> (i32, i32) {
    %c0_i32 = arith.constant 0 : i32
    %c0_i32_0 = arith.constant 0 : i32
    %c0_i32_1 = arith.constant 0 : i32
    return %c0_i32, %c0_i32_0 : i32, i32
  }
  func.func @transform_3(%arg0: i32, %arg1: i32) -> (i32, i32) {
    %c0_i32 = arith.constant 0 : i32
    %c0_i32_0 = arith.constant 0 : i32
    %c0_i32_1 = arith.constant 0 : i32
    return %c0_i32, %c0_i32_0 : i32, i32
  }
  func.func @transform_4(%arg0: i32, %arg1: i32) -> (i32, i32) {
    %c0_i32 = arith.constant 0 : i32
    %c0_i32_0 = arith.constant 0 : i32
    %c0_i32_1 = arith.constant 0 : i32
    return %c0_i32, %c0_i32_0 : i32, i32
  }
  func.func @transform_5(%arg0: i32, %arg1: i32) -> (i32, i32, i32) {
    %c0_i32 = arith.constant 0 : i32
    %c0_i32_0 = arith.constant 0 : i32
    return %arg0, %arg1, %c0_i32 : i32, i32, i32
  }
}

</mosaic_0001>

<llo_original>
// kernel: tpu_custom_call.1
$region0: #{tpu_custom_call.1}
  #allocation0 [shape = 'u32[]', space=smem, size = 0x4, offset = 0x4, fixed_abs, tag = 'smem constant byte address 0x4 - core index']
  #allocation1 [shape = 'u32[144,128]{1,0:T(1,128)}', space=vmem, size = 0x12000, scoped, tag = 'internal scratch']
  #allocation2 [shape = 'bf16[8,96]{1,0:T(8,128)(2,1)}', space=vmem, size = 0x800, scoped, tag = 'scratch operand']
  %s0 = inlined_call_operand.hbm [shape: bf16[2,8,32], index: 0, kind: input, shape index: {}]
  %s1 = inlined_call_operand.hbm [shape: bf16[32,96], index: 1, kind: input, shape index: {}]
  %s2 = inlined_call_operand.vmem [shape: f32[1,96], index: 2, kind: input, shape index: {}]
  %s3 = inlined_call_operand.hbm [shape: bf16[32,32], index: 3, kind: input, shape index: {}]
  %s4 = inlined_call_operand.vmem [shape: f32[1,32], index: 4, kind: input, shape index: {}]
  %s5 = inlined_call_operand.hbm [shape: f32[2,8,32], index: 5, kind: output, shape index: {}]
  %s6 = sld [smem:[#allocation0]]
  $region69: #{tpu_custom_call.1} parent=0
    _
  %s8 = ssub.s32 1, %s6
  %s9 = scalar_select 0, %s8, %s6
  $region1: #{tpu_custom_call.1} parent=0
    #allocation3 [shape = 'u8[4096]{0}', space=vmem, size = 0x1000, scoped, tag = 'input window, operand 0']
    #allocation4 [shape = 's32[2]{0}', space=sflag, size = 0x8, scoped, tag = 'scoped memory for tpu_custom_call.1']
    #allocation5 [shape = 's32[2]{0}', space=sflag, size = 0x8, scoped, tag = 'scoped memory for tpu_custom_call.1']
    #allocation6 [shape = 'u8[8192]{0}', space=vmem, size = 0x2000, scoped, tag = 'input window, operand 1, single buffered']
    #allocation7 [shape = 's32[1]{0}', space=sflag, size = 0x4, scoped, tag = 'scoped memory for tpu_custom_call.1']
    #allocation8 [shape = 'u8[8192]{0}', space=vmem, size = 0x2000, scoped, tag = 'input window, operand 3, single buffered']
    #allocation9 [shape = 'u8[8192]{0}', space=vmem, size = 0x2000, scoped, tag = 'output window, operand 0']
    %10 = vsyncpa [#allocation4], 0
    %s11 = scalar_lea.sflag [#allocation4], 1
    %12 = vsyncpa %s11, 0
    %13 = vsyncpa [#allocation7], 0
    %14 = vsyncpa [#allocation5], 0
    %s15 = scalar_lea.sflag [#allocation5], 1
    %16 = vsyncpa %s15, 0
    loop: start=0, step=1, limit=4
    $region2: #{tpu_custom_call.1} parent=1 // loop_pre_header
      _
    $region3: #{tpu_custom_call.1} parent=1 // loop_header
      %s18 = sphi 0, %s22
      %p19 = scmp.ge.s32.totalorder %s18, 4
      %s25 = sphi 0, %s37
      %s26 = sphi 0, %s33
      %s27 = sphi 0, %s25
      %s28 = sphi 0, %s26
      %s29 = sphi 0, %s27
      %s30 = sphi 0, %s28
      %s40 = sphi 0, %s42
      %s43 = sphi 0, %s40
      %s44 = sphi 0, %s43
      %s60 = sphi 0, %s44
      %s64 = sphi 0, %s64
      %s66 = sphi 0, %s64
      %s67 = sphi 0, %s66
      %s81 = sphi 0, %s67
      %s85 = sphi 0, %s85
      %s87 = sphi 0, %s85
      %s88 = sphi 0, %s87
      %s102 = sphi 0, %s88
      %s106 = sphi 0, %s106
      %s108 = sphi 0, %s106
      %s109 = sphi 0, %s108
      %s123 = sphi 0, %s109
      %s127 = sphi 0, %s127
      %s129 = sphi 0, %s127
      %s130 = sphi 0, %s129
      %s144 = sphi 0, %s130
      %s152 = sphi 0, %s154
      %s155 = sphi 0, %s152
      %s156 = sphi 0, %s155
      %s172 = sphi 0, %s156
    $region4: #{tpu_custom_call.1} parent=1 // loop_header_branch
      %21 = sbr.rel (%p19) target = $region8
    $region5: #{tpu_custom_call.1} parent=1 // loop_body
      %s23 = ssub.s32 %s18, 1
      %s24 = ssub.s32 %s18, 2
      %s31 = sadd.s32 1, %s26
      %p32 = scmp.ge.s32.totalorder %s31, 1
      %s33 = scalar_select %p32, 0, %s31
      %s34 = sadd.s32 1, %s25
      %s35 = scalar_select %p32, %s34, %s25
      %p36 = scmp.ge.s32.totalorder %s35, 2
      %s37 = scalar_select %p36, 0, %s35
      %s38 = ssub.s32 %s25, %s37
      %p39 = scmp.eq.s32.totalorder %s38, 0
      %s41 = sadd.s32 %s40, 1
      %s42 = scalar_select %p39, %s40, %s41
      %p45 = pneg %p39
      %p46 = scmp.eq.s32.totalorder %s18, 1
      %p47 = por %p45, %p46
      %p48 = scmp.ne.s32.totalorder %s40, %s43
      %p49 = scmp.eq.s32.totalorder %s18, 0
      %p50 = por %p48, %p49
      %p51 = scmp.ne.s32.totalorder %s40, %s43
      %p52 = scmp.eq.s32.totalorder %s23, 1
      %p53 = por %p51, %p52
      %p54 = scmp.ne.s32.totalorder %s43, %s44
      %p55 = scmp.eq.s32.totalorder %s23, 0
      %p56 = por %p54, %p55
      %p57 = scmp.ne.s32.totalorder %s43, %s44
      %p58 = scmp.eq.s32.totalorder %s24, 1
      %p59 = por %p57, %p58
      %p61 = scmp.ne.s32.totalorder %s44, %s60
      %p62 = scmp.eq.s32.totalorder %s24, 0
      %p63 = por %p61, %p62
      %s65 = sadd.s32 %s64, 1
      %p68 = scmp.eq.s32.totalorder %s18, 1
      %p69 = scmp.ne.s32.totalorder %s64, %s66
      %p70 = scmp.eq.s32.totalorder %s18, 0
      %p71 = por %p69, %p70
      %p72 = scmp.ne.s32.totalorder %s64, %s66
      %p73 = scmp.eq.s32.totalorder %s23, 1
      %p74 = por %p72, %p73
      %p75 = scmp.ne.s32.totalorder %s66, %s67
      %p76 = scmp.eq.s32.totalorder %s23, 0
      %p77 = por %p75, %p76
      %p78 = scmp.ne.s32.totalorder %s66, %s67
      %p79 = scmp.eq.s32.totalorder %s24, 1
      %p80 = por %p78, %p79
      %p82 = scmp.ne.s32.totalorder %s67, %s81
      %p83 = scmp.eq.s32.totalorder %s24, 0
      %p84 = por %p82, %p83
      %s86 = sadd.s32 %s85, 1
      %p89 = scmp.eq.s32.totalorder %s18, 1
      %p90 = scmp.ne.s32.totalorder %s85, %s87
      %p91 = scmp.eq.s32.totalorder %s18, 0
      %p92 = por %p90, %p91
      %p93 = scmp.ne.s32.totalorder %s85, %s87
      %p94 = scmp.eq.s32.totalorder %s23, 1
      %p95 = por %p93, %p94
      %p96 = scmp.ne.s32.totalorder %s87, %s88
      %p97 = scmp.eq.s32.totalorder %s23, 0
      %p98 = por %p96, %p97
      %p99 = scmp.ne.s32.totalorder %s87, %s88
      %p100 = scmp.eq.s32.totalorder %s24, 1
      %p101 = por %p99, %p100
      %p103 = scmp.ne.s32.totalorder %s88, %s102
      %p104 = scmp.eq.s32.totalorder %s24, 0
      %p105 = por %p103, %p104
      %s107 = sadd.s32 %s106, 1
      %p110 = scmp.eq.s32.totalorder %s18, 1
      %p111 = scmp.ne.s32.totalorder %s106, %s108
      %p112 = scmp.eq.s32.totalorder %s18, 0
      %p113 = por %p111, %p112
      %p114 = scmp.ne.s32.totalorder %s106, %s108
      %p115 = scmp.eq.s32.totalorder %s23, 1
      %p116 = por %p114, %p115
      %p117 = scmp.ne.s32.totalorder %s108, %s109
      %p118 = scmp.eq.s32.totalorder %s23, 0
      %p119 = por %p117, %p118
      %p120 = scmp.ne.s32.totalorder %s108, %s109
      %p121 = scmp.eq.s32.totalorder %s24, 1
      %p122 = por %p120, %p121
      %p124 = scmp.ne.s32.totalorder %s109, %s123
      %p125 = scmp.eq.s32.totalorder %s24, 0
      %p126 = por %p124, %p125
      %s128 = sadd.s32 %s127, 1
      %p131 = scmp.eq.s32.totalorder %s18, 1
      %p132 = scmp.ne.s32.totalorder %s127, %s129
      %p133 = scmp.eq.s32.totalorder %s18, 0
      %p134 = por %p132, %p133
      %p135 = scmp.ne.s32.totalorder %s127, %s129
      %p136 = scmp.eq.s32.totalorder %s23, 1
      %p137 = por %p135, %p136
      %p138 = scmp.ne.s32.totalorder %s129, %s130
      %p139 = scmp.eq.s32.totalorder %s23, 0
      %p140 = por %p138, %p139
      %p141 = scmp.ne.s32.totalorder %s129, %s130
      %p142 = scmp.eq.s32.totalorder %s24, 1
      %p143 = por %p141, %p142
      %p145 = scmp.ne.s32.totalorder %s130, %s144
      %p146 = scmp.eq.s32.totalorder %s24, 0
      %p147 = por %p145, %p146
      %s148 = ssub.s32 %s25, %s37
      %s149 = ssub.s32 %s26, %s33
      %s150 = sor.u32 %s148, %s149
      %p151 = scmp.eq.s32.totalorder %s150, 0
      %s153 = sadd.s32 %s152, 1
      %s154 = scalar_select %p151, %s152, %s153
      %p157 = pneg %p151
      %p158 = scmp.eq.s32.totalorder %s18, 1
      %p159 = por %p157, %p158
      %p160 = scmp.ne.s32.totalorder %s152, %s155
      %p161 = scmp.eq.s32.totalorder %s18, 0
      %p162 = por %p160, %p161
      %p163 = scmp.ne.s32.totalorder %s152, %s155
      %p164 = scmp.eq.s32.totalorder %s23, 1
      %p165 = por %p163, %p164
      %p166 = scmp.ne.s32.totalorder %s155, %s156
      %p167 = scmp.eq.s32.totalorder %s23, 0
      %p168 = por %p166, %p167
      %p169 = scmp.ne.s32.totalorder %s155, %s156
      %p170 = scmp.eq.s32.totalorder %s24, 1
      %p171 = por %p169, %p170
      %p173 = scmp.ne.s32.totalorder %s156, %s172
      %p174 = scmp.eq.s32.totalorder %s24, 0
      %p175 = por %p173, %p174
      %p176 = scmp.le.s32.totalorder 1, %s18
      %p177 = scmp.lt.s32.totalorder %s18, 3
      %p178 = pnand %p176, %p177
      %p179 = pneg %p178
      // Predicated region
      $region9: #{tpu_custom_call.1} parent=5 // pred_check
        _
      $region10: #{tpu_custom_call.1} parent=5 // pred_check_branch
        %181 = sbr.rel (%p178) target = $region12
      $region11: #{tpu_custom_call.1} parent=5 // pred_region
        %s182 = ssub.s32 %s18, 1
        // Predicated region
        $region13: #{tpu_custom_call.1} parent=11 // pred_check
          %p183 = pneg %p77
        $region14: #{tpu_custom_call.1} parent=11 // pred_check_branch
          %185 = sbr.rel (%p183) target = $region16
        $region15: #{tpu_custom_call.1} parent=11 // pred_region
          %s187 = ssub.s32 256, 256
          %188 = vsyncadd [#allocation7], %s187
          %s189 = sshll.u32 [#allocation6], 4
          %s190 = int_to_ptr.vmem [resolvable:$true] %s189
          %195 = dma.hbm_to_vmem [thread:$0]  %s1, 256, %s190, [#allocation7], 64, 64, 4
        $region16: #{tpu_custom_call.1} parent=11 // pred_fallthru
          _
        // Predicated region
        $region17: #{tpu_custom_call.1} parent=11 // pred_check
          %p196 = pneg %p98
        $region18: #{tpu_custom_call.1} parent=11 // pred_check_branch
          %198 = sbr.rel (%p196) target = $region20
        $region19: #{tpu_custom_call.1} parent=11 // pred_region
          _
        $region20: #{tpu_custom_call.1} parent=11 // pred_fallthru
          _
        // Predicated region
        $region21: #{tpu_custom_call.1} parent=11 // pred_check
          %p199 = pneg %p119
        $region22: #{tpu_custom_call.1} parent=11 // pred_check_branch
          %201 = sbr.rel (%p199) target = $region24
        $region23: #{tpu_custom_call.1} parent=11 // pred_region
          %s203 = ssub.s32 256, 256
          %204 = vsyncadd [#allocation7], %s203
          %s205 = sshll.u32 [#allocation8], 4
          %s206 = int_to_ptr.vmem [resolvable:$true] %s205
          %211 = dma.hbm_to_vmem [thread:$0]  %s3, 256, %s206, [#allocation7], 64, 64, 4
        $region24: #{tpu_custom_call.1} parent=11 // pred_fallthru
          _
        // Predicated region
        $region25: #{tpu_custom_call.1} parent=11 // pred_check
          %p212 = pneg %p140
        $region26: #{tpu_custom_call.1} parent=11 // pred_check_branch
          %214 = sbr.rel (%p212) target = $region28
        $region27: #{tpu_custom_call.1} parent=11 // pred_region
          _
        $region28: #{tpu_custom_call.1} parent=11 // pred_fallthru
          _
      $region12: #{tpu_custom_call.1} parent=5 // pred_fallthru
        _
      %p215 = scmp.lt.s32.totalorder %s18, 2
      // Predicated region
      $region29: #{tpu_custom_call.1} parent=5 // pred_check
        %p216 = pneg %p215
      $region30: #{tpu_custom_call.1} parent=5 // pred_check_branch
        %218 = sbr.rel (%p216) target = $region32
      $region31: #{tpu_custom_call.1} parent=5 // pred_region
        // Predicated region
        $region33: #{tpu_custom_call.1} parent=31 // pred_check
          %p219 = pneg %p50
        $region34: #{tpu_custom_call.1} parent=31 // pred_check_branch
          %221 = sbr.rel (%p219) target = $region36
        $region35: #{tpu_custom_call.1} parent=31 // pred_region
          %s222 = sand.u32 %s40, 1
          %s223 = scalar_lea.sflag [#allocation4], %s222
          %s224 = sand.u32 %s40, 1
          %s225 = smul.addr %s224, 4
          %s226 = scalar_lea.vmem [#allocation3], %s225
          %s228 = ssub.s32 64, 64
          %229 = vsyncadd %s223, %s228
          %s230 = smul.addr %s25, 64
          %s231 = scalar_lea.hbm %s0, %s230
          %s233 = sshll.u32 %s226, 4
          %s234 = int_to_ptr.vmem [resolvable:$true] %s233
          %236 = dma.hbm_to_vmem [thread:$0]  %s231, 64, %s234, %s223
        $region36: #{tpu_custom_call.1} parent=31 // pred_fallthru
          _
      $region32: #{tpu_custom_call.1} parent=5 // pred_fallthru
        _
      %p237 = scmp.le.s32.totalorder 1, %s18
      %p238 = scmp.lt.s32.totalorder %s18, 3
      %p239 = pnand %p237, %p238
      %p240 = pneg %p239
      // Predicated region
      $region37: #{tpu_custom_call.1} parent=5 // pred_check
        _
      $region38: #{tpu_custom_call.1} parent=5 // pred_check_branch
        %242 = sbr.rel (%p239) target = $region40
      $region39: #{tpu_custom_call.1} parent=5 // pred_region
        %s243 = ssub.s32 %s18, 1
        %s244 = sand.u32 %s43, 1
        %s245 = scalar_lea.sflag [#allocation4], %s244
        %s246 = sand.u32 %s43, 1
        %s247 = smul.addr %s246, 4
        %s248 = scalar_lea.vmem [#allocation3], %s247
        // Predicated region
        $region41: #{tpu_custom_call.1} parent=39 // pred_check
          %p249 = pneg %p56
        $region42: #{tpu_custom_call.1} parent=39 // pred_check_branch
          %251 = sbr.rel (%p249) target = $region44
        $region43: #{tpu_custom_call.1} parent=39 // pred_region
          %252 = dma.done %s245, 64
        $region44: #{tpu_custom_call.1} parent=39 // pred_fallthru
          _
        // Predicated region
        $region45: #{tpu_custom_call.1} parent=39 // pred_check
          %p253 = pneg %p77
        $region46: #{tpu_custom_call.1} parent=39 // pred_check_branch
          %255 = sbr.rel (%p253) target = $region48
        $region47: #{tpu_custom_call.1} parent=39 // pred_region
          %256 = dma.done [#allocation7], 256
        $region48: #{tpu_custom_call.1} parent=39 // pred_fallthru
          _
        // Predicated region
        $region49: #{tpu_custom_call.1} parent=39 // pred_check
          %p257 = pneg %p119
        $region50: #{tpu_custom_call.1} parent=39 // pred_check_branch
          %259 = sbr.rel (%p257) target = $region52
        $region51: #{tpu_custom_call.1} parent=39 // pred_region
          %260 = dma.done [#allocation7], 256
        $region52: #{tpu_custom_call.1} parent=39 // pred_fallthru
          _
        %s261 = sand.u32 %s43, 1
        %s262 = scalar_lea.sflag [#allocation4], %s261
        %s263 = sand.u32 %s43, 1
        %s264 = smul.addr %s263, 4
        %s265 = scalar_lea.vmem [#allocation3], %s264
        %p266 = pneg %p56
        %p267 = pneg %p53
        %p268 = pneg %p77
        %p269 = pneg %p74
        %p270 = pneg %p98
        %p271 = pneg %p95
        %p272 = pneg %p119
        %p273 = pneg %p116
        %p274 = pneg %p140
        %p275 = pneg %p137
        %p276 = pneg %p168
        %p277 = pneg %p165
        %s278 = sand.u32 %s155, 1
        %s279 = scalar_lea.sflag [#allocation5], %s278
        %s280 = sand.u32 %s155, 1
        %s281 = smul.addr %s280, 8
        %s282 = scalar_lea.vmem [#allocation9], %s281
        %p284 = scmp.eq.s32.totalorder %s28, 0
        // Predicated region
        $region53: #{tpu_custom_call.1} parent=39 // pred_check
          %p285 = pneg %p284
        $region54: #{tpu_custom_call.1} parent=39 // pred_check_branch
          %287 = sbr.rel (%p285) target = $region56
        $region55: #{tpu_custom_call.1} parent=39 // pred_region
          %v288 = vld [vmem:[%s248] sm:$0xf]
          %v289 = vld [vmem:[#allocation6] sm:$0xf]
          %v290 = vld [vmem:[#allocation6 + $0x4] sm:$0xf]
          %v291 = vld [vmem:[#allocation6 + $0x8] sm:$0xf]
          %v292 = vld [vmem:[#allocation6 + $0xc] sm:$0xf]
          %v293 = vld [vmem:[%s2] sm:$0x1]
          %v295 = vlaneseq
          %v296 = vshrl.u32 %v295, 7
          %v297 = vsub.s32 0, %v296
          %v298 = vrot.slane %v293, %v297
          %v304 = vunpack.c.l.b16 %v289
          %v305 = vunpack.c.l.b16 %v290
          %v306 = vunpack.c.l.b16 %v291
          %v307 = vunpack.c.l.b16 %v292
          %v308 = vpack.c.b16 %v305, %v304
          %v309 = vpack.c.b16 %v307, %v306
          %vm312 = vcmask 261120
          %v314 = vsel %vm312, %v288, 0
          %316 = vmatprep.subr.bf16.mxu0 0
          %317 = vmatpush1.bf16.msra.mxu0 %v308
          %318 = vmatprep.subr.bf16.mxu0 0
          %319 = vmatpush1.bf16.msra.mxu0 %v309
          %320 = vmatprep.subr.bf16.mxu0 0
          %321 = vmatpush1.bf16.msra.mxu0 0
          %322 = vmatprep.subr.bf16.mxu0 0
          %323 = vmatpush1.bf16.msra.mxu0 0
          %324 = vmatprep.subr.bf16.mxu0 0
          %325 = vmatpush1.bf16.msra.mxu0 0
          %326 = vmatprep.subr.bf16.mxu0 0
          %327 = vmatpush1.bf16.msra.mxu0 0
          %328 = vmatprep.subr.bf16.mxu0 0
          %329 = vmatpush1.bf16.msra.mxu0 0
          %330 = vmatprep.subr.bf16.mxu0 0
          %331 = vmatpush1.bf16.msra.mxu0 0
          %332 = vmatprep.subr.bf16.mxu0 0
          %333 = vmatpush1.bf16.msra.mxu0 0
          %334 = vmatprep.subr.bf16.mxu0 0
          %335 = vmatpush1.bf16.msra.mxu0 0
          %336 = vmatprep.subr.bf16.mxu0 0
          %337 = vmatpush1.bf16.msra.mxu0 0
          %338 = vmatprep.subr.bf16.mxu0 0
          %339 = vmatpush1.bf16.msra.mxu0 0
          %340 = vmatprep.subr.bf16.mxu0 0
          %341 = vmatpush1.bf16.msra.mxu0 0
          %342 = vmatprep.subr.bf16.mxu0 0
          %343 = vmatpush1.bf16.msra.mxu0 0
          %344 = vmatprep.subr.bf16.mxu0 0
          %345 = vmatpush1.bf16.msra.mxu0 0
          %346 = vmatprep.subr.bf16.mxu0 0
          %347 = vmatpush1.bf16.msra.mxu0 0
          %348 = vmatprep.mubr.bf16.mxu0 0
          %349 = vmatmul.mubr.bf16.gmra.mrb[0].mxu0 %v314
          %v350 = vpop.f32.mrb[0].mxu0
          %v351 = vadd.f32 %v298, %v350
          %v352 = vpop.f32.mrb[0].mxu0
          %v353 = vpop.f32.mrb[0].mxu0
          %v354 = vpop.f32.mrb[0].mxu0
          %355 = vdwg.mxu0
          %v356 = vpack.c.bf16 %v351, %v351
          %vm357 = vcmask 781312
          %358 = vst.msk [vmem:[#allocation2] sm:$0xf] %vm357, %v356
        $region56: #{tpu_custom_call.1} parent=39 // pred_fallthru
          _
        %s359 = smul.u32 %s28, 8
        %s360 = sshra.s32 %s359, 3
        %s361 = sand.u32 %s359, 7
        %s362 = smul.addr %s360, 4
        %s363 = scalar_lea.vmem [#allocation2], %s362
        %v364 = vld [vmem:[%s363] sm:$0xf]
        %v365 = vld [vmem:[#allocation2] sm:$0xf]
        %v367 = vunpack.c.l.b16 %v365
        %v368 = vpack.c.b16 %v367, %v367
        %369 = vrot.lane.b32.xlu0 %v368, 96
        %v370 = vpop.permute.xlu0 %369
        %vm371 = vcmask 31744
        %v373 = vsel %vm371, %v364, 0
        %v376 = vsel %vm371, %v370, 0
        %378 = vmatprep.subr.bf16.mxu0 0
        %379 = vmatpush1.bf16.xpose.msra.mxu0 %v376
        %380 = vmatprep.subr.bf16.mxu0 0
        %381 = vmatpush1.bf16.xpose.msra.mxu0 0
        %382 = vmatprep.subr.bf16.mxu0 0
        %383 = vmatpush1.bf16.xpose.msra.mxu0 0
        %384 = vmatprep.subr.bf16.mxu0 0
        %385 = vmatpush1.bf16.xpose.msra.mxu0 0
        %386 = vmatprep.subr.bf16.mxu0 0
        %387 = vmatpush1.bf16.xpose.msra.mxu0 0
        %388 = vmatprep.subr.bf16.mxu0 0
        %389 = vmatpush1.bf16.xpose.msra.mxu0 0
        %390 = vmatprep.subr.bf16.mxu0 0
        %391 = vmatpush1.bf16.xpose.msra.mxu0 0
        %392 = vmatprep.subr.bf16.mxu0 0
        %393 = vmatpush1.bf16.xpose.msra.mxu0 0
        %394 = vmatprep.subr.bf16.mxu0 0
        %395 = vmatpush1.bf16.xpose.msra.mxu0 0
        %396 = vmatprep.subr.bf16.mxu0 0
        %397 = vmatpush1.bf16.xpose.msra.mxu0 0
        %398 = vmatprep.subr.bf16.mxu0 0
        %399 = vmatpush1.bf16.xpose.msra.mxu0 0
        %400 = vmatprep.subr.bf16.mxu0 0
        %401 = vmatpush1.bf16.xpose.msra.mxu0 0
        %402 = vmatprep.subr.bf16.mxu0 0
        %403 = vmatpush1.bf16.xpose.msra.mxu0 0
        %404 = vmatprep.subr.bf16.mxu0 0
        %405 = vmatpush1.bf16.xpose.msra.mxu0 0
        %406 = vmatprep.subr.bf16.mxu0 0
        %407 = vmatpush1.bf16.xpose.msra.mxu0 0
        %408 = vmatprep.subr.bf16.mxu0 0
        %409 = vmatpush1.bf16.xpose.msra.mxu0 0
        %410 = vmatprep.mubr.bf16.mxu0 0
        %411 = vmatmul.mubr.bf16.gmra.mrb[0].mxu0 %v373
        %v412 = vpop.f32.mrb[0].mxu0
        %v413 = vadd.f32 0.0, %v412
        %v414 = vpop.f32.mrb[0].mxu0
        %v415 = vpop.f32.mrb[0].mxu0
        %v416 = vpop.f32.mrb[0].mxu0
        %417 = vdwg.mxu0
        %v418 = vmul.f32 %v413, 0.5
        %vm419 = vcmask 64512
        %v420 = vsel %vm419, %v418, -inf
        %421 = vmax.xlane.f32.xlu0 %v420
        %v422 = vpop.xlane.xlu0 %421
        %v423 = vsub.f32 %v418, %v422
        %v424 = vmul.f32 %v423, 1.442695
        %v425 = vpow.pop %v424
        %v426 = vsel %vm419, %v425, 0.0
        %427 = vadd.xlane.f32.xlu0 %v426
        %v428 = vpop.xlane.xlu0 %427
        %v429 = vrcp.pop %v428
        %v430 = vmul.f32 %v425, %v429
        %v431 = vpack.c.bf16 %v430, %v430
        %432 = vrot.lane.b32.xlu0 %v368, 64
        %v433 = vpop.permute.xlu0 %432
        %v435 = vsel %vm419, %v431, 0
        %vm437 = vcmask 1043456
        %v439 = vsel %vm437, %v433, 0
        %441 = vmatprep.subr.bf16.mxu0 0
        %442 = vmatpush1.bf16.msra.mxu0 %v439
        %443 = vmatprep.subr.bf16.mxu0 0
        %444 = vmatpush1.bf16.msra.mxu0 0
        %445 = vmatprep.subr.bf16.mxu0 0
        %446 = vmatpush1.bf16.msra.mxu0 0
        %447 = vmatprep.subr.bf16.mxu0 0
        %448 = vmatpush1.bf16.msra.mxu0 0
        %449 = vmatprep.subr.bf16.mxu0 0
        %450 = vmatpush1.bf16.msra.mxu0 0
        %451 = vmatprep.subr.bf16.mxu0 0
        %452 = vmatpush1.bf16.msra.mxu0 0
        %453 = vmatprep.subr.bf16.mxu0 0
        %454 = vmatpush1.bf16.msra.mxu0 0
        %455 = vmatprep.subr.bf16.mxu0 0
        %456 = vmatpush1.bf16.msra.mxu0 0
        %457 = vmatprep.subr.bf16.mxu0 0
        %458 = vmatpush1.bf16.msra.mxu0 0
        %459 = vmatprep.subr.bf16.mxu0 0
        %460 = vmatpush1.bf16.msra.mxu0 0
        %461 = vmatprep.subr.bf16.mxu0 0
        %462 = vmatpush1.bf16.msra.mxu0 0
        %463 = vmatprep.subr.bf16.mxu0 0
        %464 = vmatpush1.bf16.msra.mxu0 0
        %465 = vmatprep.subr.bf16.mxu0 0
        %466 = vmatpush1.bf16.msra.mxu0 0
        %467 = vmatprep.subr.bf16.mxu0 0
        %468 = vmatpush1.bf16.msra.mxu0 0
        %469 = vmatprep.subr.bf16.mxu0 0
        %470 = vmatpush1.bf16.msra.mxu0 0
        %471 = vmatprep.subr.bf16.mxu0 0
        %472 = vmatpush1.bf16.msra.mxu0 0
        %473 = vmatprep.mubr.bf16.mxu0 0
        %474 = vmatmul.mubr.bf16.gmra.mrb[0].mxu0 %v435
        %v475 = vpop.f32.mrb[0].mxu0
        %v476 = vadd.f32 0.0, %v475
        %v477 = vpop.f32.mrb[0].mxu0
        %v478 = vpop.f32.mrb[0].mxu0
        %v479 = vpop.f32.mrb[0].mxu0
        %480 = vdwg.mxu0
        %v482 = vunpack.c.l.b16 %v364
        %v483 = vpack.c.b16 %v482, %v482
        %484 = vrot.lane.b32.xlu0 %v483, 124
        %v485 = vpop.permute.xlu0 %484
        %486 = vrot.lane.b32.xlu0 %v368, 92
        %v487 = vpop.permute.xlu0 %486
        %v489 = vsel %vm371, %v485, 0
        %v492 = vsel %vm371, %v487, 0
        %494 = vmatprep.subr.bf16.mxu0 0
        %495 = vmatpush1.bf16.xpose.msra.mxu0 %v492
        %496 = vmatprep.subr.bf16.mxu0 0
        %497 = vmatpush1.bf16.xpose.msra.mxu0 0
        %498 = vmatprep.subr.bf16.mxu0 0
        %499 = vmatpush1.bf16.xpose.msra.mxu0 0
        %500 = vmatprep.subr.bf16.mxu0 0
        %501 = vmatpush1.bf16.xpose.msra.mxu0 0
        %502 = vmatprep.subr.bf16.mxu0 0
        %503 = vmatpush1.bf16.xpose.msra.mxu0 0
        %504 = vmatprep.subr.bf16.mxu0 0
        %505 = vmatpush1.bf16.xpose.msra.mxu0 0
        %506 = vmatprep.subr.bf16.mxu0 0
        %507 = vmatpush1.bf16.xpose.msra.mxu0 0
        %508 = vmatprep.subr.bf16.mxu0 0
        %509 = vmatpush1.bf16.xpose.msra.mxu0 0
        %510 = vmatprep.subr.bf16.mxu0 0
        %511 = vmatpush1.bf16.xpose.msra.mxu0 0
        %512 = vmatprep.subr.bf16.mxu0 0
        %513 = vmatpush1.bf16.xpose.msra.mxu0 0
        %514 = vmatprep.subr.bf16.mxu0 0
        %515 = vmatpush1.bf16.xpose.msra.mxu0 0
        %516 = vmatprep.subr.bf16.mxu0 0
        %517 = vmatpush1.bf16.xpose.msra.mxu0 0
        %518 = vmatprep.subr.bf16.mxu0 0
        %519 = vmatpush1.bf16.xpose.msra.mxu0 0
        %520 = vmatprep.subr.bf16.mxu0 0
        %521 = vmatpush1.bf16.xpose.msra.mxu0 0
        %522 = vmatprep.subr.bf16.mxu0 0
        %523 = vmatpush1.bf16.xpose.msra.mxu0 0
        %524 = vmatprep.subr.bf16.mxu0 0
        %525 = vmatpush1.bf16.xpose.msra.mxu0 0
        %526 = vmatprep.mubr.bf16.mxu0 0
        %527 = vmatmul.mubr.bf16.gmra.mrb[0].mxu0 %v489
        %v528 = vpop.f32.mrb[0].mxu0
        %v529 = vadd.f32 0.0, %v528
        %v530 = vpop.f32.mrb[0].mxu0
        %v531 = vpop.f32.mrb[0].mxu0
        %v532 = vpop.f32.mrb[0].mxu0
        %533 = vdwg.mxu0
        %v534 = vmul.f32 %v529, 0.5
        %v535 = vsel %vm419, %v534, -inf
        %536 = vmax.xlane.f32.xlu0 %v535
        %v537 = vpop.xlane.xlu0 %536
        %v538 = vsub.f32 %v534, %v537
        %v539 = vmul.f32 %v538, 1.442695
        %v540 = vpow.pop %v539
        %v541 = vsel %vm419, %v540, 0.0
        %542 = vadd.xlane.f32.xlu0 %v541
        %v543 = vpop.xlane.xlu0 %542
        %v544 = vrcp.pop %v543
        %v545 = vmul.f32 %v540, %v544
        %v546 = vpack.c.bf16 %v545, %v545
        %547 = vrot.lane.b32.xlu0 %v368, 60
        %v548 = vpop.permute.xlu0 %547
        %v550 = vsel %vm419, %v546, 0
        %v553 = vsel %vm437, %v548, 0
        %555 = vmatprep.subr.bf16.mxu0 0
        %556 = vmatpush1.bf16.msra.mxu0 %v553
        %557 = vmatprep.subr.bf16.mxu0 0
        %558 = vmatpush1.bf16.msra.mxu0 0
        %559 = vmatprep.subr.bf16.mxu0 0
        %560 = vmatpush1.bf16.msra.mxu0 0
        %561 = vmatprep.subr.bf16.mxu0 0
        %562 = vmatpush1.bf16.msra.mxu0 0
        %563 = vmatprep.subr.bf16.mxu0 0
        %564 = vmatpush1.bf16.msra.mxu0 0
        %565 = vmatprep.subr.bf16.mxu0 0
        %566 = vmatpush1.bf16.msra.mxu0 0
        %567 = vmatprep.subr.bf16.mxu0 0
        %568 = vmatpush1.bf16.msra.mxu0 0
        %569 = vmatprep.subr.bf16.mxu0 0
        %570 = vmatpush1.bf16.msra.mxu0 0
        %571 = vmatprep.subr.bf16.mxu0 0
        %572 = vmatpush1.bf16.msra.mxu0 0
        %573 = vmatprep.subr.bf16.mxu0 0
        %574 = vmatpush1.bf16.msra.mxu0 0
        %575 = vmatprep.subr.bf16.mxu0 0
        %576 = vmatpush1.bf16.msra.mxu0 0
        %577 = vmatprep.subr.bf16.mxu0 0
        %578 = vmatpush1.bf16.msra.mxu0 0
        %579 = vmatprep.subr.bf16.mxu0 0
        %580 = vmatpush1.bf16.msra.mxu0 0
        %581 = vmatprep.subr.bf16.mxu0 0
        %582 = vmatpush1.bf16.msra.mxu0 0
        %583 = vmatprep.subr.bf16.mxu0 0
        %584 = vmatpush1.bf16.msra.mxu0 0
        %585 = vmatprep.subr.bf16.mxu0 0
        %586 = vmatpush1.bf16.msra.mxu0 0
        %587 = vmatprep.mubr.bf16.mxu0 0
        %588 = vmatmul.mubr.bf16.gmra.mrb[0].mxu0 %v550
        %v589 = vpop.f32.mrb[0].mxu0
        %v590 = vadd.f32 0.0, %v589
        %v591 = vpop.f32.mrb[0].mxu0
        %v592 = vpop.f32.mrb[0].mxu0
        %v593 = vpop.f32.mrb[0].mxu0
        %594 = vdwg.mxu0
        %595 = vrot.lane.b32.xlu0 %v483, 120
        %v596 = vpop.permute.xlu0 %595
        %597 = vrot.lane.b32.xlu0 %v368, 88
        %v598 = vpop.permute.xlu0 %597
        %v600 = vsel %vm371, %v596, 0
        %v603 = vsel %vm371, %v598, 0
        %605 = vmatprep.subr.bf16.mxu0 0
        %606 = vmatpush1.bf16.xpose.msra.mxu0 %v603
        %607 = vmatprep.subr.bf16.mxu0 0
        %608 = vmatpush1.bf16.xpose.msra.mxu0 0
        %609 = vmatprep.subr.bf16.mxu0 0
        %610 = vmatpush1.bf16.xpose.msra.mxu0 0
        %611 = vmatprep.subr.bf16.mxu0 0
        %612 = vmatpush1.bf16.xpose.msra.mxu0 0
        %613 = vmatprep.subr.bf16.mxu0 0
        %614 = vmatpush1.bf16.xpose.msra.mxu0 0
        %615 = vmatprep.subr.bf16.mxu0 0
        %616 = vmatpush1.bf16.xpose.msra.mxu0 0
        %617 = vmatprep.subr.bf16.mxu0 0
        %618 = vmatpush1.bf16.xpose.msra.mxu0 0
        %619 = vmatprep.subr.bf16.mxu0 0
        %620 = vmatpush1.bf16.xpose.msra.mxu0 0
        %621 = vmatprep.subr.bf16.mxu0 0
        %622 = vmatpush1.bf16.xpose.msra.mxu0 0
        %623 = vmatprep.subr.bf16.mxu0 0
        %624 = vmatpush1.bf16.xpose.msra.mxu0 0
        %625 = vmatprep.subr.bf16.mxu0 0
        %626 = vmatpush1.bf16.xpose.msra.mxu0 0
        %627 = vmatprep.subr.bf16.mxu0 0
        %628 = vmatpush1.bf16.xpose.msra.mxu0 0
        %629 = vmatprep.subr.bf16.mxu0 0
        %630 = vmatpush1.bf16.xpose.msra.mxu0 0
        %631 = vmatprep.subr.bf16.mxu0 0
        %632 = vmatpush1.bf16.xpose.msra.mxu0 0
        %633 = vmatprep.subr.bf16.mxu0 0
        %634 = vmatpush1.bf16.xpose.msra.mxu0 0
        %635 = vmatprep.subr.bf16.mxu0 0
        %636 = vmatpush1.bf16.xpose.msra.mxu0 0
        %637 = vmatprep.mubr.bf16.mxu0 0
        %638 = vmatmul.mubr.bf16.gmra.mrb[0].mxu0 %v600
        %v639 = vpop.f32.mrb[0].mxu0
        %v640 = vadd.f32 0.0, %v639
        %v641 = vpop.f32.mrb[0].mxu0
        %v642 = vpop.f32.mrb[0].mxu0
        %v643 = vpop.f32.mrb[0].mxu0
        %644 = vdwg.mxu0
        %v645 = vmul.f32 %v640, 0.5
        %v646 = vsel %vm419, %v645, -inf
        %647 = vmax.xlane.f32.xlu0 %v646
        %v648 = vpop.xlane.xlu0 %647
        %v649 = vsub.f32 %v645, %v648
        %v650 = vmul.f32 %v649, 1.442695
        %v651 = vpow.pop %v650
        %v652 = vsel %vm419, %v651, 0.0
        %653 = vadd.xlane.f32.xlu0 %v652
        %v654 = vpop.xlane.xlu0 %653
        %v655 = vrcp.pop %v654
        %v656 = vmul.f32 %v651, %v655
        %v657 = vpack.c.bf16 %v656, %v656
        %658 = vrot.lane.b32.xlu0 %v368, 56
        %v659 = vpop.permute.xlu0 %658
        %v661 = vsel %vm419, %v657, 0
        %v664 = vsel %vm437, %v659, 0
        %666 = vmatprep.subr.bf16.mxu0 0
        %667 = vmatpush1.bf16.msra.mxu0 %v664
        %668 = vmatprep.subr.bf16.mxu0 0
        %669 = vmatpush1.bf16.msra.mxu0 0
        %670 = vmatprep.subr.bf16.mxu0 0
        %671 = vmatpush1.bf16.msra.mxu0 0
        %672 = vmatprep.subr.bf16.mxu0 0
        %673 = vmatpush1.bf16.msra.mxu0 0
        %674 = vmatprep.subr.bf16.mxu0 0
        %675 = vmatpush1.bf16.msra.mxu0 0
        %676 = vmatprep.subr.bf16.mxu0 0
        %677 = vmatpush1.bf16.msra.mxu0 0
        %678 = vmatprep.subr.bf16.mxu0 0
        %679 = vmatpush1.bf16.msra.mxu0 0
        %680 = vmatprep.subr.bf16.mxu0 0
        %681 = vmatpush1.bf16.msra.mxu0 0
        %682 = vmatprep.subr.bf16.mxu0 0
        %683 = vmatpush1.bf16.msra.mxu0 0
        %684 = vmatprep.subr.bf16.mxu0 0
        %685 = vmatpush1.bf16.msra.mxu0 0
        %686 = vmatprep.subr.bf16.mxu0 0
        %687 = vmatpush1.bf16.msra.mxu0 0
        %688 = vmatprep.subr.bf16.mxu0 0
        %689 = vmatpush1.bf16.msra.mxu0 0
        %690 = vmatprep.subr.bf16.mxu0 0
        %691 = vmatpush1.bf16.msra.mxu0 0
        %692 = vmatprep.subr.bf16.mxu0 0
        %693 = vmatpush1.bf16.msra.mxu0 0
        %694 = vmatprep.subr.bf16.mxu0 0
        %695 = vmatpush1.bf16.msra.mxu0 0
        %696 = vmatprep.subr.bf16.mxu0 0
        %697 = vmatpush1.bf16.msra.mxu0 0
        %698 = vmatprep.mubr.bf16.mxu0 0
        %699 = vmatmul.mubr.bf16.gmra.mrb[0].mxu0 %v661
        %v700 = vpop.f32.mrb[0].mxu0
        %v701 = vadd.f32 0.0, %v700
        %v702 = vpop.f32.mrb[0].mxu0
        %v703 = vpop.f32.mrb[0].mxu0
        %v704 = vpop.f32.mrb[0].mxu0
        %705 = vdwg.mxu0
        %706 = vrot.lane.b32.xlu0 %v483, 116
        %v707 = vpop.permute.xlu0 %706
        %708 = vrot.lane.b32.xlu0 %v368, 84
        %v709 = vpop.permute.xlu0 %708
        %v711 = vsel %vm371, %v707, 0
        %v714 = vsel %vm371, %v709, 0
        %716 = vmatprep.subr.bf16.mxu0 0
        %717 = vmatpush1.bf16.xpose.msra.mxu0 %v714
        %718 = vmatprep.subr.bf16.mxu0 0
        %719 = vmatpush1.bf16.xpose.msra.mxu0 0
        %720 = vmatprep.subr.bf16.mxu0 0
        %721 = vmatpush1.bf16.xpose.msra.mxu0 0
        %722 = vmatprep.subr.bf16.mxu0 0
        %723 = vmatpush1.bf16.xpose.msra.mxu0 0
        %724 = vmatprep.subr.bf16.mxu0 0
        %725 = vmatpush1.bf16.xpose.msra.mxu0 0
        %726 = vmatprep.subr.bf16.mxu0 0
        %727 = vmatpush1.bf16.xpose.msra.mxu0 0
        %728 = vmatprep.subr.bf16.mxu0 0
        %729 = vmatpush1.bf16.xpose.msra.mxu0 0
        %730 = vmatprep.subr.bf16.mxu0 0
        %731 = vmatpush1.bf16.xpose.msra.mxu0 0
        %732 = vmatprep.subr.bf16.mxu0 0
        %733 = vmatpush1.bf16.xpose.msra.mxu0 0
        %734 = vmatprep.subr.bf16.mxu0 0
        %735 = vmatpush1.bf16.xpose.msra.mxu0 0
        %736 = vmatprep.subr.bf16.mxu0 0
        %737 = vmatpush1.bf16.xpose.msra.mxu0 0
        %738 = vmatprep.subr.bf16.mxu0 0
        %739 = vmatpush1.bf16.xpose.msra.mxu0 0
        %740 = vmatprep.subr.bf16.mxu0 0
        %741 = vmatpush1.bf16.xpose.msra.mxu0 0
        %742 = vmatprep.subr.bf16.mxu0 0
        %743 = vmatpush1.bf16.xpose.msra.mxu0 0
        %744 = vmatprep.subr.bf16.mxu0 0
        %745 = vmatpush1.bf16.xpose.msra.mxu0 0
        %746 = vmatprep.subr.bf16.mxu0 0
        %747 = vmatpush1.bf16.xpose.msra.mxu0 0
        %748 = vmatprep.mubr.bf16.mxu0 0
        %749 = vmatmul.mubr.bf16.gmra.mrb[0].mxu0 %v711
        %v750 = vpop.f32.mrb[0].mxu0
        %v751 = vadd.f32 0.0, %v750
        %v752 = vpop.f32.mrb[0].mxu0
        %v753 = vpop.f32.mrb[0].mxu0
        %v754 = vpop.f32.mrb[0].mxu0
        %755 = vdwg.mxu0
        %v756 = vmul.f32 %v751, 0.5
        %v757 = vsel %vm419, %v756, -inf
        %758 = vmax.xlane.f32.xlu0 %v757
        %v759 = vpop.xlane.xlu0 %758
        %v760 = vsub.f32 %v756, %v759
        %v761 = vmul.f32 %v760, 1.442695
        %v762 = vpow.pop %v761
        %v763 = vsel %vm419, %v762, 0.0
        %764 = vadd.xlane.f32.xlu0 %v763
        %v765 = vpop.xlane.xlu0 %764
        %v766 = vrcp.pop %v765
        %v767 = vmul.f32 %v762, %v766
        %v768 = vpack.c.bf16 %v767, %v767
        %769 = vrot.lane.b32.xlu0 %v368, 52
        %v770 = vpop.permute.xlu0 %769
        %v772 = vsel %vm419, %v768, 0
        %v775 = vsel %vm437, %v770, 0
        %777 = vmatprep.subr.bf16.mxu0 0
        %778 = vmatpush1.bf16.msra.mxu0 %v775
        %779 = vmatprep.subr.bf16.mxu0 0
        %780 = vmatpush1.bf16.msra.mxu0 0
        %781 = vmatprep.subr.bf16.mxu0 0
        %782 = vmatpush1.bf16.msra.mxu0 0
        %783 = vmatprep.subr.bf16.mxu0 0
        %784 = vmatpush1.bf16.msra.mxu0 0
        %785 = vmatprep.subr.bf16.mxu0 0
        %786 = vmatpush1.bf16.msra.mxu0 0
        %787 = vmatprep.subr.bf16.mxu0 0
        %788 = vmatpush1.bf16.msra.mxu0 0
        %789 = vmatprep.subr.bf16.mxu0 0
        %790 = vmatpush1.bf16.msra.mxu0 0
        %791 = vmatprep.subr.bf16.mxu0 0
        %792 = vmatpush1.bf16.msra.mxu0 0
        %793 = vmatprep.subr.bf16.mxu0 0
        %794 = vmatpush1.bf16.msra.mxu0 0
        %795 = vmatprep.subr.bf16.mxu0 0
        %796 = vmatpush1.bf16.msra.mxu0 0
        %797 = vmatprep.subr.bf16.mxu0 0
        %798 = vmatpush1.bf16.msra.mxu0 0
        %799 = vmatprep.subr.bf16.mxu0 0
        %800 = vmatpush1.bf16.msra.mxu0 0
        %801 = vmatprep.subr.bf16.mxu0 0
        %802 = vmatpush1.bf16.msra.mxu0 0
        %803 = vmatprep.subr.bf16.mxu0 0
        %804 = vmatpush1.bf16.msra.mxu0 0
        %805 = vmatprep.subr.bf16.mxu0 0
        %806 = vmatpush1.bf16.msra.mxu0 0
        %807 = vmatprep.subr.bf16.mxu0 0
        %808 = vmatpush1.bf16.msra.mxu0 0
        %809 = vmatprep.mubr.bf16.mxu0 0
        %810 = vmatmul.mubr.bf16.gmra.mrb[0].mxu0 %v772
        %v811 = vpop.f32.mrb[0].mxu0
        %v812 = vadd.f32 0.0, %v811
        %v813 = vpop.f32.mrb[0].mxu0
        %v814 = vpop.f32.mrb[0].mxu0
        %v815 = vpop.f32.mrb[0].mxu0
        %816 = vdwg.mxu0
        %817 = vrot.lane.b32.xlu0 %v483, 112
        %v818 = vpop.permute.xlu0 %817
        %819 = vrot.lane.b32.xlu0 %v368, 80
        %v820 = vpop.permute.xlu0 %819
        %v822 = vsel %vm371, %v818, 0
        %v825 = vsel %vm371, %v820, 0
        %827 = vmatprep.subr.bf16.mxu0 0
        %828 = vmatpush1.bf16.xpose.msra.mxu0 %v825
        %829 = vmatprep.subr.bf16.mxu0 0
        %830 = vmatpush1.bf16.xpose.msra.mxu0 0
        %831 = vmatprep.subr.bf16.mxu0 0
        %832 = vmatpush1.bf16.xpose.msra.mxu0 0
        %833 = vmatprep.subr.bf16.mxu0 0
        %834 = vmatpush1.bf16.xpose.msra.mxu0 0
        %835 = vmatprep.subr.bf16.mxu0 0
        %836 = vmatpush1.bf16.xpose.msra.mxu0 0
        %837 = vmatprep.subr.bf16.mxu0 0
        %838 = vmatpush1.bf16.xpose.msra.mxu0 0
        %839 = vmatprep.subr.bf16.mxu0 0
        %840 = vmatpush1.bf16.xpose.msra.mxu0 0
        %841 = vmatprep.subr.bf16.mxu0 0
        %842 = vmatpush1.bf16.xpose.msra.mxu0 0
        %843 = vmatprep.subr.bf16.mxu0 0
        %844 = vmatpush1.bf16.xpose.msra.mxu0 0
        %845 = vmatprep.subr.bf16.mxu0 0
        %846 = vmatpush1.bf16.xpose.msra.mxu0 0
        %847 = vmatprep.subr.bf16.mxu0 0
        %848 = vmatpush1.bf16.xpose.msra.mxu0 0
        %849 = vmatprep.subr.bf16.mxu0 0
        %850 = vmatpush1.bf16.xpose.msra.mxu0 0
        %851 = vmatprep.subr.bf16.mxu0 0
        %852 = vmatpush1.bf16.xpose.msra.mxu0 0
        %853 = vmatprep.subr.bf16.mxu0 0
        %854 = vmatpush1.bf16.xpose.msra.mxu0 0
        %855 = vmatprep.subr.bf16.mxu0 0
        %856 = vmatpush1.bf16.xpose.msra.mxu0 0
        %857 = vmatprep.subr.bf16.mxu0 0
        %858 = vmatpush1.bf16.xpose.msra.mxu0 0
        %859 = vmatprep.mubr.bf16.mxu0 0
        %860 = vmatmul.mubr.bf16.gmra.mrb[0].mxu0 %v822
        %v861 = vpop.f32.mrb[0].mxu0
        %v862 = vadd.f32 0.0, %v861
        %v863 = vpop.f32.mrb[0].mxu0
        %v864 = vpop.f32.mrb[0].mxu0
        %v865 = vpop.f32.mrb[0].mxu0
        %866 = vdwg.mxu0
        %v867 = vmul.f32 %v862, 0.5
        %v868 = vsel %vm419, %v867, -inf
        %869 = vmax.xlane.f32.xlu0 %v868
        %v870 = vpop.xlane.xlu0 %869
        %v871 = vsub.f32 %v867, %v870
        %v872 = vmul.f32 %v871, 1.442695
        %v873 = vpow.pop %v872
        %v874 = vsel %vm419, %v873, 0.0
        %875 = vadd.xlane.f32.xlu0 %v874
        %v876 = vpop.xlane.xlu0 %875
        %v877 = vrcp.pop %v876
        %v878 = vmul.f32 %v873, %v877
        %v879 = vpack.c.bf16 %v878, %v878
        %880 = vrot.lane.b32.xlu0 %v368, 48
        %v881 = vpop.permute.xlu0 %880
        %v883 = vsel %vm419, %v879, 0
        %v886 = vsel %vm437, %v881, 0
        %888 = vmatprep.subr.bf16.mxu0 0
        %889 = vmatpush1.bf16.msra.mxu0 %v886
        %890 = vmatprep.subr.bf16.mxu0 0
        %891 = vmatpush1.bf16.msra.mxu0 0
        %892 = vmatprep.subr.bf16.mxu0 0
        %893 = vmatpush1.bf16.msra.mxu0 0
        %894 = vmatprep.subr.bf16.mxu0 0
        %895 = vmatpush1.bf16.msra.mxu0 0
        %896 = vmatprep.subr.bf16.mxu0 0
        %897 = vmatpush1.bf16.msra.mxu0 0
        %898 = vmatprep.subr.bf16.mxu0 0
        %899 = vmatpush1.bf16.msra.mxu0 0
        %900 = vmatprep.subr.bf16.mxu0 0
        %901 = vmatpush1.bf16.msra.mxu0 0
        %902 = vmatprep.subr.bf16.mxu0 0
        %903 = vmatpush1.bf16.msra.mxu0 0
        %904 = vmatprep.subr.bf16.mxu0 0
        %905 = vmatpush1.bf16.msra.mxu0 0
        %906 = vmatprep.subr.bf16.mxu0 0
        %907 = vmatpush1.bf16.msra.mxu0 0
        %908 = vmatprep.subr.bf16.mxu0 0
        %909 = vmatpush1.bf16.msra.mxu0 0
        %910 = vmatprep.subr.bf16.mxu0 0
        %911 = vmatpush1.bf16.msra.mxu0 0
        %912 = vmatprep.subr.bf16.mxu0 0
        %913 = vmatpush1.bf16.msra.mxu0 0
        %914 = vmatprep.subr.bf16.mxu0 0
        %915 = vmatpush1.bf16.msra.mxu0 0
        %916 = vmatprep.subr.bf16.mxu0 0
        %917 = vmatpush1.bf16.msra.mxu0 0
        %918 = vmatprep.subr.bf16.mxu0 0
        %919 = vmatpush1.bf16.msra.mxu0 0
        %920 = vmatprep.mubr.bf16.mxu0 0
        %921 = vmatmul.mubr.bf16.gmra.mrb[0].mxu0 %v883
        %v922 = vpop.f32.mrb[0].mxu0
        %v923 = vadd.f32 0.0, %v922
        %v924 = vpop.f32.mrb[0].mxu0
        %v925 = vpop.f32.mrb[0].mxu0
        %v926 = vpop.f32.mrb[0].mxu0
        %927 = vdwg.mxu0
        %928 = vrot.lane.b32.xlu0 %v483, 108
        %v929 = vpop.permute.xlu0 %928
        %930 = vrot.lane.b32.xlu0 %v368, 76
        %v931 = vpop.permute.xlu0 %930
        %v933 = vsel %vm371, %v929, 0
        %v936 = vsel %vm371, %v931, 0
        %938 = vmatprep.subr.bf16.mxu0 0
        %939 = vmatpush1.bf16.xpose.msra.mxu0 %v936
        %940 = vmatprep.subr.bf16.mxu0 0
        %941 = vmatpush1.bf16.xpose.msra.mxu0 0
        %942 = vmatprep.subr.bf16.mxu0 0
        %943 = vmatpush1.bf16.xpose.msra.mxu0 0
        %944 = vmatprep.subr.bf16.mxu0 0
        %945 = vmatpush1.bf16.xpose.msra.mxu0 0
        %946 = vmatprep.subr.bf16.mxu0 0
        %947 = vmatpush1.bf16.xpose.msra.mxu0 0
        %948 = vmatprep.subr.bf16.mxu0 0
        %949 = vmatpush1.bf16.xpose.msra.mxu0 0
        %950 = vmatprep.subr.bf16.mxu0 0
        %951 = vmatpush1.bf16.xpose.msra.mxu0 0
        %952 = vmatprep.subr.bf16.mxu0 0
        %953 = vmatpush1.bf16.xpose.msra.mxu0 0
        %954 = vmatprep.subr.bf16.mxu0 0
        %955 = vmatpush1.bf16.xpose.msra.mxu0 0
        %956 = vmatprep.subr.bf16.mxu0 0
        %957 = vmatpush1.bf16.xpose.msra.mxu0 0
        %958 = vmatprep.subr.bf16.mxu0 0
        %959 = vmatpush1.bf16.xpose.msra.mxu0 0
        %960 = vmatprep.subr.bf16.mxu0 0
        %961 = vmatpush1.bf16.xpose.msra.mxu0 0
        %962 = vmatprep.subr.bf16.mxu0 0
        %963 = vmatpush1.bf16.xpose.msra.mxu0 0
        %964 = vmatprep.subr.bf16.mxu0 0
        %965 = vmatpush1.bf16.xpose.msra.mxu0 0
        %966 = vmatprep.subr.bf16.mxu0 0
        %967 = vmatpush1.bf16.xpose.msra.mxu0 0
        %968 = vmatprep.subr.bf16.mxu0 0
        %969 = vmatpush1.bf16.xpose.msra.mxu0 0
        %970 = vmatprep.mubr.bf16.mxu0 0
        %971 = vmatmul.mubr.bf16.gmra.mrb[0].mxu0 %v933
        %v972 = vpop.f32.mrb[0].mxu0
        %v973 = vadd.f32 0.0, %v972
        %v974 = vpop.f32.mrb[0].mxu0
        %v975 = vpop.f32.mrb[0].mxu0
        %v976 = vpop.f32.mrb[0].mxu0
        %977 = vdwg.mxu0
        %v978 = vmul.f32 %v973, 0.5
        %v979 = vsel %vm419, %v978, -inf
        %980 = vmax.xlane.f32.xlu0 %v979
        %v981 = vpop.xlane.xlu0 %980
        %v982 = vsub.f32 %v978, %v981
        %v983 = vmul.f32 %v982, 1.442695
        %v984 = vpow.pop %v983
        %v985 = vsel %vm419, %v984, 0.0
        %986 = vadd.xlane.f32.xlu0 %v985
        %v987 = vpop.xlane.xlu0 %986
        %v988 = vrcp.pop %v987
        %v989 = vmul.f32 %v984, %v988
        %v990 = vpack.c.bf16 %v989, %v989
        %991 = vrot.lane.b32.xlu0 %v368, 44
        %v992 = vpop.permute.xlu0 %991
        %v994 = vsel %vm419, %v990, 0
        %v997 = vsel %vm437, %v992, 0
        %999 = vmatprep.subr.bf16.mxu0 0
        %1000 = vmatpush1.bf16.msra.mxu0 %v997
        %1001 = vmatprep.subr.bf16.mxu0 0
        %1002 = vmatpush1.bf16.msra.mxu0 0
        %1003 = vmatprep.subr.bf16.mxu0 0
        %1004 = vmatpush1.bf16.msra.mxu0 0
        %1005 = vmatprep.subr.bf16.mxu0 0
        %1006 = vmatpush1.bf16.msra.mxu0 0
        %1007 = vmatprep.subr.bf16.mxu0 0
        %1008 = vmatpush1.bf16.msra.mxu0 0
        %1009 = vmatprep.subr.bf16.mxu0 0
        %1010 = vmatpush1.bf16.msra.mxu0 0
        %1011 = vmatprep.subr.bf16.mxu0 0
        %1012 = vmatpush1.bf16.msra.mxu0 0
        %1013 = vmatprep.subr.bf16.mxu0 0
        %1014 = vmatpush1.bf16.msra.mxu0 0
        %1015 = vmatprep.subr.bf16.mxu0 0
        %1016 = vmatpush1.bf16.msra.mxu0 0
        %1017 = vmatprep.subr.bf16.mxu0 0
        %1018 = vmatpush1.bf16.msra.mxu0 0
        %1019 = vmatprep.subr.bf16.mxu0 0
        %1020 = vmatpush1.bf16.msra.mxu0 0
        %1021 = vmatprep.subr.bf16.mxu0 0
        %1022 = vmatpush1.bf16.msra.mxu0 0
        %1023 = vmatprep.subr.bf16.mxu0 0
        %1024 = vmatpush1.bf16.msra.mxu0 0
        %1025 = vmatprep.subr.bf16.mxu0 0
        %1026 = vmatpush1.bf16.msra.mxu0 0
        %1027 = vmatprep.subr.bf16.mxu0 0
        %1028 = vmatpush1.bf16.msra.mxu0 0
        %1029 = vmatprep.subr.bf16.mxu0 0
        %1030 = vmatpush1.bf16.msra.mxu0 0
        %1031 = vmatprep.mubr.bf16.mxu0 0
        %1032 = vmatmul.mubr.bf16.gmra.mrb[0].mxu0 %v994
        %v1033 = vpop.f32.mrb[0].mxu0
        %v1034 = vadd.f32 0.0, %v1033
        %v1035 = vpop.f32.mrb[0].mxu0
        %v1036 = vpop.f32.mrb[0].mxu0
        %v1037 = vpop.f32.mrb[0].mxu0
        %1038 = vdwg.mxu0
        %1039 = vrot.lane.b32.xlu0 %v483, 104
        %v1040 = vpop.permute.xlu0 %1039
        %1041 = vrot.lane.b32.xlu0 %v368, 72
        %v1042 = vpop.permute.xlu0 %1041
        %v1044 = vsel %vm371, %v1040, 0
        %v1047 = vsel %vm371, %v1042, 0
        %1049 = vmatprep.subr.bf16.mxu0 0
        %1050 = vmatpush1.bf16.xpose.msra.mxu0 %v1047
        %1051 = vmatprep.subr.bf16.mxu0 0
        %1052 = vmatpush1.bf16.xpose.msra.mxu0 0
        %1053 = vmatprep.subr.bf16.mxu0 0
        %1054 = vmatpush1.bf16.xpose.msra.mxu0 0
        %1055 = vmatprep.subr.bf16.mxu0 0
        %1056 = vmatpush1.bf16.xpose.msra.mxu0 0
        %1057 = vmatprep.subr.bf16.mxu0 0
        %1058 = vmatpush1.bf16.xpose.msra.mxu0 0
        %1059 = vmatprep.subr.bf16.mxu0 0
        %1060 = vmatpush1.bf16.xpose.msra.mxu0 0
        %1061 = vmatprep.subr.bf16.mxu0 0
        %1062 = vmatpush1.bf16.xpose.msra.mxu0 0
        %1063 = vmatprep.subr.bf16.mxu0 0
        %1064 = vmatpush1.bf16.xpose.msra.mxu0 0
        %1065 = vmatprep.subr.bf16.mxu0 0
        %1066 = vmatpush1.bf16.xpose.msra.mxu0 0
        %1067 = vmatprep.subr.bf16.mxu0 0
        %1068 = vmatpush1.bf16.xpose.msra.mxu0 0
        %1069 = vmatprep.subr.bf16.mxu0 0
        %1070 = vmatpush1.bf16.xpose.msra.mxu0 0
        %1071 = vmatprep.subr.bf16.mxu0 0
        %1072 = vmatpush1.bf16.xpose.msra.mxu0 0
        %1073 = vmatprep.subr.bf16.mxu0 0
        %1074 = vmatpush1.bf16.xpose.msra.mxu0 0
        %1075 = vmatprep.subr.bf16.mxu0 0
        %1076 = vmatpush1.bf16.xpose.msra.mxu0 0
        %1077 = vmatprep.subr.bf16.mxu0 0
        %1078 = vmatpush1.bf16.xpose.msra.mxu0 0
        %1079 = vmatprep.subr.bf16.mxu0 0
        %1080 = vmatpush1.bf16.xpose.msra.mxu0 0
        %1081 = vmatprep.mubr.bf16.mxu0 0
        %1082 = vmatmul.mubr.bf16.gmra.mrb[0].mxu0 %v1044
        %v1083 = vpop.f32.mrb[0].mxu0
        %v1084 = vadd.f32 0.0, %v1083
        %v1085 = vpop.f32.mrb[0].mxu0
        %v1086 = vpop.f32.mrb[0].mxu0
        %v1087 = vpop.f32.mrb[0].mxu0
        %1088 = vdwg.mxu0
        %v1089 = vmul.f32 %v1084, 0.5
        %v1090 = vsel %vm419, %v1089, -inf
        %1091 = vmax.xlane.f32.xlu0 %v1090
        %v1092 = vpop.xlane.xlu0 %1091
        %v1093 = vsub.f32 %v1089, %v1092
        %v1094 = vmul.f32 %v1093, 1.442695
        %v1095 = vpow.pop %v1094
        %v1096 = vsel %vm419, %v1095, 0.0
        %1097 = vadd.xlane.f32.xlu0 %v1096
        %v1098 = vpop.xlane.xlu0 %1097
        %v1099 = vrcp.pop %v1098
        %v1100 = vmul.f32 %v1095, %v1099
        %v1101 = vpack.c.bf16 %v1100, %v1100
        %1102 = vrot.lane.b32.xlu0 %v368, 40
        %v1103 = vpop.permute.xlu0 %1102
        %v1105 = vsel %vm419, %v1101, 0
        %v1108 = vsel %vm437, %v1103, 0
        %1110 = vmatprep.subr.bf16.mxu0 0
        %1111 = vmatpush1.bf16.msra.mxu0 %v1108
        %1112 = vmatprep.subr.bf16.mxu0 0
        %1113 = vmatpush1.bf16.msra.mxu0 0
        %1114 = vmatprep.subr.bf16.mxu0 0
        %1115 = vmatpush1.bf16.msra.mxu0 0
        %1116 = vmatprep.subr.bf16.mxu0 0
        %1117 = vmatpush1.bf16.msra.mxu0 0
        %1118 = vmatprep.subr.bf16.mxu0 0
        %1119 = vmatpush1.bf16.msra.mxu0 0
        %1120 = vmatprep.subr.bf16.mxu0 0
        %1121 = vmatpush1.bf16.msra.mxu0 0
        %1122 = vmatprep.subr.bf16.mxu0 0
        %1123 = vmatpush1.bf16.msra.mxu0 0
        %1124 = vmatprep.subr.bf16.mxu0 0
        %1125 = vmatpush1.bf16.msra.mxu0 0
        %1126 = vmatprep.subr.bf16.mxu0 0
        %1127 = vmatpush1.bf16.msra.mxu0 0
        %1128 = vmatprep.subr.bf16.mxu0 0
        %1129 = vmatpush1.bf16.msra.mxu0 0
        %1130 = vmatprep.subr.bf16.mxu0 0
        %1131 = vmatpush1.bf16.msra.mxu0 0
        %1132 = vmatprep.subr.bf16.mxu0 0
        %1133 = vmatpush1.bf16.msra.mxu0 0
        %1134 = vmatprep.subr.bf16.mxu0 0
        %1135 = vmatpush1.bf16.msra.mxu0 0
        %1136 = vmatprep.subr.bf16.mxu0 0
        %1137 = vmatpush1.bf16.msra.mxu0 0
        %1138 = vmatprep.subr.bf16.mxu0 0
        %1139 = vmatpush1.bf16.msra.mxu0 0
        %1140 = vmatprep.subr.bf16.mxu0 0
        %1141 = vmatpush1.bf16.msra.mxu0 0
        %1142 = vmatprep.mubr.bf16.mxu0 0
        %1143 = vmatmul.mubr.bf16.gmra.mrb[0].mxu0 %v1105
        %v1144 = vpop.f32.mrb[0].mxu0
        %v1145 = vadd.f32 0.0, %v1144
        %v1146 = vpop.f32.mrb[0].mxu0
        %v1147 = vpop.f32.mrb[0].mxu0
        %v1148 = vpop.f32.mrb[0].mxu0
        %1149 = vdwg.mxu0
        %1150 = vrot.lane.b32.xlu0 %v483, 100
        %v1151 = vpop.permute.xlu0 %1150
        %1152 = vrot.lane.b32.xlu0 %v368, 68
        %v1153 = vpop.permute.xlu0 %1152
        %v1155 = vsel %vm371, %v1151, 0
        %v1158 = vsel %vm371, %v1153, 0
        %1160 = vmatprep.subr.bf16.mxu0 0
        %1161 = vmatpush1.bf16.xpose.msra.mxu0 %v1158
        %1162 = vmatprep.subr.bf16.mxu0 0
        %1163 = vmatpush1.bf16.xpose.msra.mxu0 0
        %1164 = vmatprep.subr.bf16.mxu0 0
        %1165 = vmatpush1.bf16.xpose.msra.mxu0 0
        %1166 = vmatprep.subr.bf16.mxu0 0
        %1167 = vmatpush1.bf16.xpose.msra.mxu0 0
        %1168 = vmatprep.subr.bf16.mxu0 0
        %1169 = vmatpush1.bf16.xpose.msra.mxu0 0
        %1170 = vmatprep.subr.bf16.mxu0 0
        %1171 = vmatpush1.bf16.xpose.msra.mxu0 0
        %1172 = vmatprep.subr.bf16.mxu0 0
        %1173 = vmatpush1.bf16.xpose.msra.mxu0 0
        %1174 = vmatprep.subr.bf16.mxu0 0
        %1175 = vmatpush1.bf16.xpose.msra.mxu0 0
        %1176 = vmatprep.subr.bf16.mxu0 0
        %1177 = vmatpush1.bf16.xpose.msra.mxu0 0
        %1178 = vmatprep.subr.bf16.mxu0 0
        %1179 = vmatpush1.bf16.xpose.msra.mxu0 0
        %1180 = vmatprep.subr.bf16.mxu0 0
        %1181 = vmatpush1.bf16.xpose.msra.mxu0 0
        %1182 = vmatprep.subr.bf16.mxu0 0
        %1183 = vmatpush1.bf16.xpose.msra.mxu0 0
        %1184 = vmatprep.subr.bf16.mxu0 0
        %1185 = vmatpush1.bf16.xpose.msra.mxu0 0
        %1186 = vmatprep.subr.bf16.mxu0 0
        %1187 = vmatpush1.bf16.xpose.msra.mxu0 0
        %1188 = vmatprep.subr.bf16.mxu0 0
        %1189 = vmatpush1.bf16.xpose.msra.mxu0 0
        %1190 = vmatprep.subr.bf16.mxu0 0
        %1191 = vmatpush1.bf16.xpose.msra.mxu0 0
        %1192 = vmatprep.mubr.bf16.mxu0 0
        %1193 = vmatmul.mubr.bf16.gmra.mrb[0].mxu0 %v1155
        %v1194 = vpop.f32.mrb[0].mxu0
        %v1195 = vadd.f32 0.0, %v1194
        %v1196 = vpop.f32.mrb[0].mxu0
        %v1197 = vpop.f32.mrb[0].mxu0
        %v1198 = vpop.f32.mrb[0].mxu0
        %1199 = vdwg.mxu0
        %v1200 = vmul.f32 %v1195, 0.5
        %v1201 = vsel %vm419, %v1200, -inf
        %1202 = vmax.xlane.f32.xlu0 %v1201
        %v1203 = vpop.xlane.xlu0 %1202
        %v1204 = vsub.f32 %v1200, %v1203
        %v1205 = vmul.f32 %v1204, 1.442695
        %v1206 = vpow.pop %v1205
        %v1207 = vsel %vm419, %v1206, 0.0
        %1208 = vadd.xlane.f32.xlu0 %v1207
        %v1209 = vpop.xlane.xlu0 %1208
        %v1210 = vrcp.pop %v1209
        %v1211 = vmul.f32 %v1206, %v1210
        %v1212 = vpack.c.bf16 %v1211, %v1211
        %1213 = vrot.lane.b32.xlu0 %v368, 36
        %v1214 = vpop.permute.xlu0 %1213
        %v1216 = vsel %vm419, %v1212, 0
        %v1219 = vsel %vm437, %v1214, 0
        %1221 = vmatprep.subr.bf16.mxu0 0
        %1222 = vmatpush1.bf16.msra.mxu0 %v1219
        %1223 = vmatprep.subr.bf16.mxu0 0
        %1224 = vmatpush1.bf16.msra.mxu0 0
        %1225 = vmatprep.subr.bf16.mxu0 0
        %1226 = vmatpush1.bf16.msra.mxu0 0
        %1227 = vmatprep.subr.bf16.mxu0 0
        %1228 = vmatpush1.bf16.msra.mxu0 0
        %1229 = vmatprep.subr.bf16.mxu0 0
        %1230 = vmatpush1.bf16.msra.mxu0 0
        %1231 = vmatprep.subr.bf16.mxu0 0
        %1232 = vmatpush1.bf16.msra.mxu0 0
        %1233 = vmatprep.subr.bf16.mxu0 0
        %1234 = vmatpush1.bf16.msra.mxu0 0
        %1235 = vmatprep.subr.bf16.mxu0 0
        %1236 = vmatpush1.bf16.msra.mxu0 0
        %1237 = vmatprep.subr.bf16.mxu0 0
        %1238 = vmatpush1.bf16.msra.mxu0 0
        %1239 = vmatprep.subr.bf16.mxu0 0
        %1240 = vmatpush1.bf16.msra.mxu0 0
        %1241 = vmatprep.subr.bf16.mxu0 0
        %1242 = vmatpush1.bf16.msra.mxu0 0
        %1243 = vmatprep.subr.bf16.mxu0 0
        %1244 = vmatpush1.bf16.msra.mxu0 0
        %1245 = vmatprep.subr.bf16.mxu0 0
        %1246 = vmatpush1.bf16.msra.mxu0 0
        %1247 = vmatprep.subr.bf16.mxu0 0
        %1248 = vmatpush1.bf16.msra.mxu0 0
        %1249 = vmatprep.subr.bf16.mxu0 0
        %1250 = vmatpush1.bf16.msra.mxu0 0
        %1251 = vmatprep.subr.bf16.mxu0 0
        %1252 = vmatpush1.bf16.msra.mxu0 0
        %1253 = vmatprep.mubr.bf16.mxu0 0
        %1254 = vmatmul.mubr.bf16.gmra.mrb[0].mxu0 %v1216
        %v1255 = vpop.f32.mrb[0].mxu0
        %v1256 = vadd.f32 0.0, %v1255
        %v1257 = vpop.f32.mrb[0].mxu0
        %v1258 = vpop.f32.mrb[0].mxu0
        %v1259 = vpop.f32.mrb[0].mxu0
        %1260 = vdwg.mxu0
        %1262 = vrot.lane.b32.xlu0 %v590, 4
        %v1263 = vpop.permute.xlu0 %1262
        %1266 = vrot.lane.b32.xlu0 %v701, 8
        %v1267 = vpop.permute.xlu0 %1266
        %1270 = vrot.lane.b32.xlu0 %v812, 12
        %v1271 = vpop.permute.xlu0 %1270
        %1274 = vrot.lane.b32.xlu0 %v923, 16
        %v1275 = vpop.permute.xlu0 %1274
        %1278 = vrot.lane.b32.xlu0 %v1034, 20
        %v1279 = vpop.permute.xlu0 %1278
        %1282 = vrot.lane.b32.xlu0 %v1145, 24
        %v1283 = vpop.permute.xlu0 %1282
        %1286 = vrot.lane.b32.xlu0 %v1256, 28
        %v1287 = vpop.permute.xlu0 %1286
        %v1289 = vsel %vm371, %v476, %v1263
        %v1290 = vsel %vm419, %v1289, %v1267
        %vm1291 = vcmask 97280
        %v1292 = vsel %vm1291, %v1290, %v1271
        %vm1293 = vcmask 130048
        %v1294 = vsel %vm1293, %v1292, %v1275
        %vm1295 = vcmask 162816
        %v1296 = vsel %vm1295, %v1294, %v1279
        %vm1297 = vcmask 195584
        %v1298 = vsel %vm1297, %v1296, %v1283
        %vm1299 = vcmask 228352
        %v1300 = vsel %vm1299, %v1298, %v1287
        %v1301 = vpack.c.bf16 %v1300, %v1300
        %v1302 = vld [vmem:[#allocation8] sm:$0xf]
        %v1303 = vld [vmem:[#allocation8 + $0x4] sm:$0xf]
        %v1304 = vld [vmem:[#allocation8 + $0x8] sm:$0xf]
        %v1305 = vld [vmem:[#allocation8 + $0xc] sm:$0xf]
        %v1306 = vld [vmem:[%s4] sm:$0x1]
        %v1308 = vlaneseq
        %v1309 = vshrl.u32 %v1308, 7
        %v1310 = vsub.s32 0, %v1309
        %v1311 = vrot.slane %v1306, %v1310
        %v1317 = vunpack.c.l.b16 %v1302
        %v1318 = vunpack.c.l.b16 %v1303
        %v1319 = vunpack.c.l.b16 %v1304
        %v1320 = vunpack.c.l.b16 %v1305
        %v1321 = vpack.c.b16 %v1318, %v1317
        %v1322 = vpack.c.b16 %v1320, %v1319
        %vm1325 = vcmask 261120
        %v1327 = vsel %vm1325, %v1301, 0
        %1329 = vmatprep.subr.bf16.mxu0 0
        %1330 = vmatpush1.bf16.msra.mxu0 %v1321
        %1331 = vmatprep.subr.bf16.mxu0 0
        %1332 = vmatpush1.bf16.msra.mxu0 %v1322
        %1333 = vmatprep.subr.bf16.mxu0 0
        %1334 = vmatpush1.bf16.msra.mxu0 0
        %1335 = vmatprep.subr.bf16.mxu0 0
        %1336 = vmatpush1.bf16.msra.mxu0 0
        %1337 = vmatprep.subr.bf16.mxu0 0
        %1338 = vmatpush1.bf16.msra.mxu0 0
        %1339 = vmatprep.subr.bf16.mxu0 0
        %1340 = vmatpush1.bf16.msra.mxu0 0
        %1341 = vmatprep.subr.bf16.mxu0 0
        %1342 = vmatpush1.bf16.msra.mxu0 0
        %1343 = vmatprep.subr.bf16.mxu0 0
        %1344 = vmatpush1.bf16.msra.mxu0 0
        %1345 = vmatprep.subr.bf16.mxu0 0
        %1346 = vmatpush1.bf16.msra.mxu0 0
        %1347 = vmatprep.subr.bf16.mxu0 0
        %1348 = vmatpush1.bf16.msra.mxu0 0
        %1349 = vmatprep.subr.bf16.mxu0 0
        %1350 = vmatpush1.bf16.msra.mxu0 0
        %1351 = vmatprep.subr.bf16.mxu0 0
        %1352 = vmatpush1.bf16.msra.mxu0 0
        %1353 = vmatprep.subr.bf16.mxu0 0
        %1354 = vmatpush1.bf16.msra.mxu0 0
        %1355 = vmatprep.subr.bf16.mxu0 0
        %1356 = vmatpush1.bf16.msra.mxu0 0
        %1357 = vmatprep.subr.bf16.mxu0 0
        %1358 = vmatpush1.bf16.msra.mxu0 0
        %1359 = vmatprep.subr.bf16.mxu0 0
        %1360 = vmatpush1.bf16.msra.mxu0 0
        %1361 = vmatprep.mubr.bf16.mxu0 0
        %1362 = vmatmul.mubr.bf16.gmra.mrb[0].mxu0 %v1327
        %v1363 = vpop.f32.mrb[0].mxu0
        %v1364 = vadd.f32 %v1311, %v1363
        %v1365 = vpop.f32.mrb[0].mxu0
        %v1366 = vpop.f32.mrb[0].mxu0
        %v1367 = vpop.f32.mrb[0].mxu0
        %1368 = vdwg.mxu0
        %1369 = vst.msk [vmem:[%s282] sm:$0xff] %vm1325, %v1364
        %s1370 = sand.u32 %s155, 1
        %s1371 = scalar_lea.sflag [#allocation5], %s1370
        %s1372 = sand.u32 %s155, 1
        %s1373 = smul.addr %s1372, 8
        %s1374 = scalar_lea.vmem [#allocation9], %s1373
        // Predicated region
        $region57: #{tpu_custom_call.1} parent=39 // pred_check
          %p1375 = pneg %p165
        $region58: #{tpu_custom_call.1} parent=39 // pred_check_branch
          %1377 = sbr.rel (%p1375) target = $region60
        $region59: #{tpu_custom_call.1} parent=39 // pred_region
          %s1379 = ssub.s32 128, 128
          %1380 = vsyncadd %s1371, %s1379
          %s1381 = sadd.s32 %s28, %s27
          %s1382 = smul.addr %s1381, 128
          %s1383 = scalar_lea.hbm %s5, %s1382
          %s1385 = sshll.u32 %s1374, 4
          %s1386 = int_to_ptr.vmem [resolvable:$true] %s1385
          %1388 = dma.vmem_to_hbm [thread:$0]  %s1386, 128, %s1383, %s1371
        $region60: #{tpu_custom_call.1} parent=39 // pred_fallthru
          _
      $region40: #{tpu_custom_call.1} parent=5 // pred_fallthru
        _
      %p1389 = scmp.le.s32.totalorder 2, %s18
      // Predicated region
      $region61: #{tpu_custom_call.1} parent=5 // pred_check
        %p1390 = pneg %p1389
      $region62: #{tpu_custom_call.1} parent=5 // pred_check_branch
        %1392 = sbr.rel (%p1390) target = $region64
      $region63: #{tpu_custom_call.1} parent=5 // pred_region
        %s1393 = ssub.s32 %s18, 2
        // Predicated region
        $region65: #{tpu_custom_call.1} parent=63 // pred_check
          %p1394 = pneg %p171
        $region66: #{tpu_custom_call.1} parent=63 // pred_check_branch
          %1396 = sbr.rel (%p1394) target = $region68
        $region67: #{tpu_custom_call.1} parent=63 // pred_region
          %s1397 = sand.u32 %s156, 1
          %s1398 = scalar_lea.sflag [#allocation5], %s1397
          %s1399 = sand.u32 %s156, 1
          %s1400 = smul.addr %s1399, 8
          %s1401 = scalar_lea.vmem [#allocation9], %s1400
          %1402 = dma.done %s1398, 128
        $region68: #{tpu_custom_call.1} parent=63 // pred_fallthru
          _
      $region64: #{tpu_custom_call.1} parent=5 // pred_fallthru
        _
    $region6: #{tpu_custom_call.1} parent=1 // loop_footer
      %s22 = sadd.s32 1, %s18
    $region7: #{tpu_custom_call.1} parent=1 // loop_footer_branch
      %17 = sbr.rel target = $region3
    $region8: #{tpu_custom_call.1} parent=1 // loop_exit
      _
    %1403 = vsyncpa [#allocation4], 1
    %s1404 = scalar_lea.sflag [#allocation4], 1
    %1405 = vsyncpa %s1404, 1
    %1406 = vsyncpa [#allocation7], 1
    %1407 = vsyncpa [#allocation5], 1
    %s1408 = scalar_lea.sflag [#allocation5], 1
    %1409 = vsyncpa %s1408, 1

</llo_original>
